<compile_context>
chip_gen: v7x
topology: tpu7x:2x2x1
jax: 0.10.0
libtpu: 0.0.40
codegen_flags: <defaults>
</compile_context>

<pallas_src>
import functools

import jax
import jax.numpy as jnp
from jax import lax
from jax.experimental import pallas as pl
from jax.experimental.pallas import tpu as pltpu


# --------------------------- small in-kernel helpers -------------------------

def _layer_norm(x, g, b, eps=1e-5):
    mu = jnp.mean(x, axis=-1, keepdims=True)
    var = jnp.mean(jnp.square(x - mu), axis=-1, keepdims=True)
    return (x - mu) * lax.rsqrt(var + eps) * g + b


# ------------------- fused dual-encoder / all-layers kernel ------------------
# grid = (encoder e in {item=0, feature=1}, layer l); activations live in a
# VMEM scratch across the l axis; output is the gathered last-step rows only.

def _fdsa_encoders_kernel(last_ref,                       # scalar prefetch (B,)
                          x_ref, bias_ref,
                          wqkv_ref, bqkv_ref, wo_ref, bo_ref,
                          ln1g_ref, ln1b_ref, w1_ref, b1_ref,
                          w2_ref, b2_ref, ln2g_ref, ln2b_ref,
                          o_ref,
                          act_ref, attn_ref,
                          *, nhead, scale):
    l = pl.program_id(1)

    @pl.when(l == 0)
    def _():
        act_ref[...] = x_ref[0]                           # (B, L, D) f32

    x3 = act_ref[...]                                     # (B, L, D)
    B, L, D = x3.shape
    Dh = D // nhead
    xf = x3.reshape(B * L, D)                             # flatten batch -> M
    bias = bias_ref[...]                                  # (B, 1, L) key-pad

    # ---- fused QKV projection (bf16 MXU operands, f32 accumulation) ----
    qkv = jnp.dot(xf.astype(jnp.bfloat16), wqkv_ref[0, 0],
                  preferred_element_type=jnp.float32) + bqkv_ref[0, 0]
    q = (qkv[:, 0:D] * scale).reshape(B, L, D)            # fold 1/sqrt(Dh)
    k = qkv[:, D:2 * D].reshape(B, L, D)
    v = qkv[:, 2 * D:3 * D].reshape(B, L, D)

    # ---- per-head attention; head outputs written to scratch lane slices ----
    for h in range(nhead):                                # static unroll
        sl = slice(h * Dh, (h + 1) * Dh)
        qh = q[:, :, sl].astype(jnp.bfloat16)
        kh = k[:, :, sl].astype(jnp.bfloat16)
        vh = v[:, :, sl].astype(jnp.bfloat16)
        s = jnp.einsum('bqd,bkd->bqk', qh, kh,
                       preferred_element_type=jnp.float32)     # (B, L, L)
        s = s + bias
        s = s - jnp.max(s, axis=-1, keepdims=True)
        p = jnp.exp(s)
        p = p * pl.reciprocal(jnp.sum(p, axis=-1, keepdims=True), approx=True)
        attn_ref[:, :, sl] = jnp.einsum('bqk,bkd->bqd',
                                        p.astype(jnp.bfloat16), vh,
                                        preferred_element_type=jnp.float32)

    # ---- out projection + residual + LayerNorm 1 ----
    attn = attn_ref[...].reshape(B * L, D)
    attn = jnp.dot(attn.astype(jnp.bfloat16), wo_ref[0, 0],
                   preferred_element_type=jnp.float32) + bo_ref[0, 0]
    y = _layer_norm(xf + attn, ln1g_ref[0, 0], ln1b_ref[0, 0])

    # ---- FFN + residual + LayerNorm 2 ----
    h1 = jnp.dot(y.astype(jnp.bfloat16), w1_ref[0, 0],
                 preferred_element_type=jnp.float32) + b1_ref[0, 0]
    h1 = jnp.maximum(h1, 0.0)
    h2 = jnp.dot(h1.astype(jnp.bfloat16), w2_ref[0, 0],
                 preferred_element_type=jnp.float32) + b2_ref[0, 0]
    y2 = _layer_norm(y + h2, ln2g_ref[0, 0], ln2b_ref[0, 0])

    act_ref[...] = y2.reshape(B, L, D)                    # carry to next layer

    # ---- fused last-valid-step gather (only on the final layer) ----
    @pl.when(l == pl.num_programs(1) - 1)
    def _():
        rows = []
        for b in range(B):                                # B is small & static
            idx = last_ref[b]                             # SMEM scalar read
            sel = (lax.broadcasted_iota(jnp.int32, (L, 1), 0) == idx
                   ).astype(jnp.float32)                  # one-hot over L
            rows.append(jnp.sum(act_ref[b] * sel, axis=0, keepdims=True))
        o_ref[0] = jnp.concatenate(rows, axis=0)          # (B, D)


def run_encoders(last, x, bias, enc, nhead):
    """x: (2, B, L, D) stacked [item, feature] embeddings -> (2, B, D)."""
    E, B, L, D = x.shape
    NL = enc["wqkv"].shape[1]
    F = enc["w1"].shape[-1]
    scale = 1.0 / float(D // nhead) ** 0.5
    kern = functools.partial(_fdsa_encoders_kernel, nhead=nhead, scale=scale)

    wsel = lambda e, l, last: (e, l, 0, 0)                # per (encoder, layer)

    return pl.pallas_call(
        kern,
        out_shape=jax.ShapeDtypeStruct((E, B, D), jnp.float32),
        grid_spec=pltpu.PrefetchScalarGridSpec(
            num_scalar_prefetch=1,
            grid=(E, NL),
            in_specs=[
                pl.BlockSpec((1, B, L, D), lambda e, l, last: (e, 0, 0, 0)),
                pl.BlockSpec((B, 1, L), lambda e, l, last: (0, 0, 0)),
                pl.BlockSpec((1, 1, D, 3 * D), wsel),     # wqkv (bf16)
                pl.BlockSpec((1, 1, 1, 3 * D), wsel),     # bqkv
                pl.BlockSpec((1, 1, D, D), wsel),         # wo   (bf16)
                pl.BlockSpec((1, 1, 1, D), wsel),         # bo
                pl.BlockSpec((1, 1, 1, D), wsel),         # ln1_g
                pl.BlockSpec((1, 1, 1, D), wsel),         # ln1_b
                pl.BlockSpec((1, 1, D, F), wsel),         # w1   (bf16)
                pl.BlockSpec((1, 1, 1, F), wsel),         # b1
                pl.BlockSpec((1, 1, F, D), wsel),         # w2   (bf16)
                pl.BlockSpec((1, 1, 1, D), wsel),         # b2
                pl.BlockSpec((1, 1, 1, D), wsel),         # ln2_g
                pl.BlockSpec((1, 1, 1, D), wsel),         # ln2_b
            ],
            out_specs=pl.BlockSpec((1, B, D), lambda e, l, last: (e, 0, 0)),
            scratch_shapes=[pltpu.VMEM((B, L, D), jnp.float32),   # activations
                            pltpu.VMEM((B, L, D), jnp.float32)],  # attn heads
        ),
        compiler_params=pltpu.CompilerParams(
            dimension_semantics=("parallel", "arbitrary")),
    )(last, x, bias,
      enc["wqkv"], enc["bqkv"], enc["wo"], enc["bo"],
      enc["ln1_g"], enc["ln1_b"], enc["w1"], enc["b1"],
      enc["w2"], enc["b2"], enc["ln2_g"], enc["ln2_b"])


# ------------------ fused final feedforward + logits kernel ------------------

def _head_kernel(rep_ref, ffw_ref, ffb_ref, emb_ref, o_ref, rep_s):
    # rep is computed once (first N tile) and cached in a VMEM scratch.
    @pl.when(pl.program_id(0) == 0)
    def _():
        rep = jnp.dot(rep_ref[...].astype(jnp.bfloat16), ffw_ref[...],
                      preferred_element_type=jnp.float32) + ffb_ref[...]
        rep_s[...] = rep.astype(jnp.bfloat16)
    # logits tile = rep @ emb_tile.T  (contract on emb's feature axis)
    o_ref[...] = lax.dot_general(
        rep_s[...], emb_ref[...],
        (((1,), (1,)), ((), ())), preferred_element_type=jnp.float32)


def fused_head(rep_in, ff_w, ff_b, emb_pad, num_items):
    B, D2 = rep_in.shape
    D = ff_w.shape[1]
    n_pad = emb_pad.shape[0]                              # multiple of TN
    Bp = pl.cdiv(B, 8) * 8                                # full sublanes
    rep_p = jnp.pad(rep_in, ((0, Bp - B), (0, 0)))

    TN = n_pad if n_pad <= 1024 else 1024                 # lane-dense N tile
    n_tiles = n_pad // TN

    emb_kwargs = {}
    if n_tiles >= 2:
        # Deeper buffering on the streamed (HBM-bound) embedding operand.
        emb_kwargs["pipeline_mode"] = pl.Buffered(3)
    emb_spec = pl.BlockSpec((TN, D), lambda n: (n, 0), **emb_kwargs)

    logits = pl.pallas_call(
        _head_kernel,
        out_shape=jax.ShapeDtypeStruct((Bp, n_pad), jnp.float32),
        grid=(n_tiles,),
        in_specs=[
            pl.BlockSpec((Bp, D2), lambda n: (0, 0)),     # rep input
            pl.BlockSpec((D2, D), lambda n: (0, 0)),      # ff_w (bf16)
            pl.BlockSpec((1, D), lambda n: (0, 0)),       # ff_b
            emb_spec,                                     # item_emb (bf16)
        ],
        out_specs=pl.BlockSpec((Bp, TN), lambda n: (0, n)),
        scratch_shapes=[pltpu.VMEM((Bp, D), jnp.bfloat16)],
        compiler_params=pltpu.CompilerParams(
            dimension_semantics=("arbitrary",)),
    )(rep_p, ff_w, ff_b, emb_pad)
    return logits[:B, :num_items]


# --------------------------------- JAX glue ----------------------------------

def fdsa_forward(params, item_seq, feature_seq, nhead):
    B, L = item_seq.shape
    mask = jnp.equal(item_seq, 0)                          # True == padding
    seq_len = jnp.sum(jnp.logical_not(mask), axis=-1)      # (B,)
    # (seq_len - 1) % L reproduces torch negative indexing (-1 wraps to L-1
    # for a fully padded row) while staying in-bounds.
    last = ((seq_len - 1) % L).astype(jnp.int32)
    bias = jnp.where(mask, -1e9, 0.0).astype(jnp.float32)[:, None, :]  # (B,1,L)

    item_x = params["item_emb"][item_seq] + params["item_pos"][:L][None]
    # NOTE: feature padding positions carry a real embedding row; they are
    # masked as attention keys and never gathered, so the output matches.
    feat_x = params["feat_emb"][feature_seq] + params["feat_pos"][:L][None]
    x = jnp.stack([item_x, feat_x], axis=0).astype(jnp.float32)   # (2,B,L,D)

    out = run_encoders(last, x, bias, params["enc"], nhead)       # (2,B,D)
    rep_in = jnp.concatenate([out[0], out[1]], axis=-1)           # (B,2D)

    return fused_head(rep_in, params["ff_w"], params["ff_b"],
                      params["emb_logits"], params["item_emb"].shape[0])


# ------------------------------ parameter init -------------------------------

def init_params(key, num_items, num_features, d_model, num_layers,
                dim_feedforward, max_len):
    keys = iter(jax.random.split(key, 64))
    D, F, NL = d_model, dim_feedforward, num_layers

    def nrm(shape, s=0.02):
        return (s * jax.random.normal(next(keys), shape)).astype(jnp.float32)

    # Layer weights stacked on (2 encoders, num_layers, ...); matmul weights
    # pre-cast to bf16 once (no per-forward converts / HBM copies).
    enc = dict(
        wqkv=nrm((2, NL, D, 3 * D)).astype(jnp.bfloat16),
        bqkv=jnp.zeros((2, NL, 1, 3 * D), jnp.float32),
        wo=nrm((2, NL, D, D)).astype(jnp.bfloat16),
        bo=jnp.zeros((2, NL, 1, D), jnp.float32),
        ln1_g=jnp.ones((2, NL, 1, D), jnp.float32),
        ln1_b=jnp.zeros((2, NL, 1, D), jnp.float32),
        w1=nrm((2, NL, D, F)).astype(jnp.bfloat16),
        b1=jnp.zeros((2, NL, 1, F), jnp.float32),
        w2=nrm((2, NL, F, D)).astype(jnp.bfloat16),
        b2=jnp.zeros((2, NL, 1, D), jnp.float32),
        ln2_g=jnp.ones((2, NL, 1, D), jnp.float32),
        ln2_b=jnp.zeros((2, NL, 1, D), jnp.float32),
    )

    item_emb = nrm((num_items, D)).at[0].set(0.0)          # padding_idx = 0

    # Pre-padded (multiple of the logits N tile), pre-cast bf16 table for the
    # logits matmul so the head kernel's stores are lane-dense.
    n128 = ((num_items + 127) // 128) * 128
    tn = n128 if n128 <= 1024 else 1024
    n_pad = tn * ((num_items + tn - 1) // tn)
    emb_logits = jnp.pad(item_emb, ((0, n_pad - num_items), (0, 0))
                         ).astype(jnp.bfloat16)

    return dict(
        item_emb=item_emb,
        feat_emb=nrm((num_features, D)),
        item_pos=nrm((max_len, D)),
        feat_pos=nrm((max_len, D)),
        enc=enc,
        ff_w=nrm((2 * D, D)).astype(jnp.bfloat16),
        ff_b=jnp.zeros((1, D), jnp.float32),
        emb_logits=emb_logits,
    )


# ----------------------------------- main -------------------------------------

if __name__ == "__main__":
    num_items = 101
    num_features = 37
    d_model = 32
    num_layers = 2
    nhead = 2
    dim_feedforward = 64
    max_len = 16
    B, L = 2, 8
    assert d_model % nhead == 0

    root = jax.random.PRNGKey(0)
    k_item, k_feat, _ = jax.random.split(root, 3)

    item_seq = jax.random.randint(k_item, (B, L), 1, num_items, dtype=jnp.int32)
    feature_seq = jax.random.randint(k_feat, (B, L), 1, num_features,
                                     dtype=jnp.int32)
    # second sequence has 3 trailing padding positions (item id 0)
    pad = jnp.array([[1] * L, [1] * 5 + [0] * 3], dtype=jnp.int32)
    item_seq = item_seq * pad
    feature_seq = feature_seq * pad

    params = init_params(jax.random.PRNGKey(42), num_items, num_features,
                         d_model, num_layers, dim_feedforward, max_len)

    fwd = jax.jit(functools.partial(fdsa_forward, nhead=nhead))
    logit = jax.block_until_ready(fwd(params, item_seq, feature_seq))

    # NOTE: bf16 MXU operands + approx reciprocal => compare against a f32
    # reference with rtol ~1e-2 if bit-level parity with PyTorch is needed.
    assert logit.shape == (B, num_items), logit.shape
    assert bool(jnp.all(jnp.isfinite(logit)))
    print("KERNEL_OK")
</pallas_src>

<mosaic_0001>
module attributes {stable_mosaic.version = 11 : i64} {
  func.func @_fdsa_encoders_kernel(%arg0: i32, %arg1: i32, %arg2: memref<2xi32, #tpu.memory_space<smem>>, %arg3: memref<1x2x8x32xf32, #tpu.memory_space<vmem>>, %arg4: memref<2x1x8xf32, #tpu.memory_space<vmem>>, %arg5: memref<1x1x32x96xbf16, #tpu.memory_space<vmem>>, %arg6: memref<1x1x1x96xf32, #tpu.memory_space<vmem>>, %arg7: memref<1x1x32x32xbf16, #tpu.memory_space<vmem>>, %arg8: memref<1x1x1x32xf32, #tpu.memory_space<vmem>>, %arg9: memref<1x1x1x32xf32, #tpu.memory_space<vmem>>, %arg10: memref<1x1x1x32xf32, #tpu.memory_space<vmem>>, %arg11: memref<1x1x32x64xbf16, #tpu.memory_space<vmem>>, %arg12: memref<1x1x1x64xf32, #tpu.memory_space<vmem>>, %arg13: memref<1x1x64x32xbf16, #tpu.memory_space<vmem>>, %arg14: memref<1x1x1x32xf32, #tpu.memory_space<vmem>>, %arg15: memref<1x1x1x32xf32, #tpu.memory_space<vmem>>, %arg16: memref<1x1x1x32xf32, #tpu.memory_space<vmem>>, %arg17: memref<1x2x32xf32, #tpu.memory_space<vmem>>, %arg18: memref<2x8x32xf32, #tpu.memory_space<vmem>>, %arg19: memref<2x8x32xf32, #tpu.memory_space<vmem>>) attributes {dimension_semantics = [#tpu.dimension_semantics<parallel>, #tpu.dimension_semantics<arbitrary>], iteration_bounds = array<i64: 2, 2>, scalar_prefetch = 1 : i64, scratch_operands = 2 : i64, tpu.core_type = #tpu.core_type<tc>, window_params = [{transform_indices = @transform_0, window_bounds = array<i64: 1, 2, 8, 32>}, {pipeline_mode = #tpu.pipeline_mode<synchronous>, transform_indices = @transform_1, window_bounds = array<i64: 2, 1, 8>}, {transform_indices = @transform_2, window_bounds = array<i64: 1, 1, 32, 96>}, {transform_indices = @transform_3, window_bounds = array<i64: 1, 1, 1, 96>}, {transform_indices = @transform_4, window_bounds = array<i64: 1, 1, 32, 32>}, {transform_indices = @transform_5, window_bounds = array<i64: 1, 1, 1, 32>}, {transform_indices = @transform_6, window_bounds = array<i64: 1, 1, 1, 32>}, {transform_indices = @transform_7, window_bounds = array<i64: 1, 1, 1, 32>}, {transform_indices = @transform_8, window_bounds = array<i64: 1, 1, 32, 64>}, {transform_indices = @transform_9, window_bounds = array<i64: 1, 1, 1, 64>}, {transform_indices = @transform_10, window_bounds = array<i64: 1, 1, 64, 32>}, {transform_indices = @transform_11, window_bounds = array<i64: 1, 1, 1, 32>}, {transform_indices = @transform_12, window_bounds = array<i64: 1, 1, 1, 32>}, {transform_indices = @transform_13, window_bounds = array<i64: 1, 1, 1, 32>}, {transform_indices = @transform_14, window_bounds = array<i64: 1, 2, 32>}]} {
    %c0_i32 = arith.constant 0 : i32
    %0 = arith.cmpi eq, %arg1, %c0_i32 : i32
    %1 = arith.extui %0 : i1 to i32
    %c0_i32_0 = arith.constant 0 : i32
    %2 = arith.cmpi ne, %1, %c0_i32_0 : i32
    scf.if %2 {
      %c0_89 = arith.constant 0 : index
      %c0_90 = arith.constant 0 : index
      %c0_91 = arith.constant 0 : index
      %c0_92 = arith.constant 0 : index
      %153 = vector.load %arg3[%c0_89, %c0_90, %c0_91, %c0_92] : memref<1x2x8x32xf32, #tpu.memory_space<vmem>>, vector<1x2x8x32xf32>
      %154 = vector.shape_cast %153 : vector<1x2x8x32xf32> to vector<2x8x32xf32>
      %c0_93 = arith.constant 0 : index
      %c0_94 = arith.constant 0 : index
      %c0_95 = arith.constant 0 : index
      %155 = vector.load %arg18[%c0_93, %c0_94, %c0_95] : memref<2x8x32xf32, #tpu.memory_space<vmem>>, vector<2x8x32xf32>
      tpu.vector_store %arg18[%c0_93, %c0_94, %c0_95], %154 {strides = array<i32>} : memref<2x8x32xf32, #tpu.memory_space<vmem>>, vector<2x8x32xf32>,
    } else {
    }
    %c0 = arith.constant 0 : index
    %c0_1 = arith.constant 0 : index
    %c0_2 = arith.constant 0 : index
    %3 = vector.load %arg18[%c0, %c0_1, %c0_2] : memref<2x8x32xf32, #tpu.memory_space<vmem>>, vector<2x8x32xf32>
    %4 = vector.shape_cast %3 : vector<2x8x32xf32> to vector<16x32xf32>
    %c0_3 = arith.constant 0 : index
    %c0_4 = arith.constant 0 : index
    %c0_5 = arith.constant 0 : index
    %5 = vector.load %arg4[%c0_3, %c0_4, %c0_5] : memref<2x1x8xf32, #tpu.memory_space<vmem>>, vector<2x1x8xf32>
    %6 = arith.truncf %4 : vector<16x32xf32> to vector<16x32xbf16>
    %c0_6 = arith.constant 0 : index
    %c0_7 = arith.constant 0 : index
    %c0_8 = arith.constant 0 : index
    %c0_9 = arith.constant 0 : index
    %7 = vector.load %arg5[%c0_6, %c0_7, %c0_8, %c0_9] : memref<1x1x32x96xbf16, #tpu.memory_space<vmem>>, vector<1x1x32x96xbf16>
    %8 = vector.shape_cast %7 : vector<1x1x32x96xbf16> to vector<32x96xbf16>
    %cst = arith.constant dense<0.000000e+00> : vector<16x96xf32>
    %9 = tpu.matmul %6, %8, %cst {dimension_numbers = #tpu.dot_dimension_numbers<[1], [0], [0], [1], [0, 0, 1, 1], [], []>} : vector<16x32xbf16>, vector<32x96xbf16>, vector<16x96xf32> -> vector<16x96xf32>
    %c0_10 = arith.constant 0 : index
    %c0_11 = arith.constant 0 : index
    %c0_12 = arith.constant 0 : index
    %c0_13 = arith.constant 0 : index
    %10 = vector.load %arg6[%c0_10, %c0_11, %c0_12, %c0_13] : memref<1x1x1x96xf32, #tpu.memory_space<vmem>>, vector<1x1x1x96xf32>
    %11 = vector.shape_cast %10 : vector<1x1x1x96xf32> to vector<1x96xf32>
    %12 = vector.broadcast %11 : vector<1x96xf32> to vector<16x96xf32>
    %13 = arith.addf %9, %12 : vector<16x96xf32>
    %14 = vector.extract_strided_slice %13 {offsets = [0, 0], sizes = [16, 32], strides = [1, 1]} : vector<16x96xf32> to vector<16x32xf32>
    %cst_14 = arith.constant 2.500000e-01 : f32
    %15 = vector.broadcast %cst_14 : f32 to vector<16x32xf32>
    %16 = arith.mulf %14, %15 : vector<16x32xf32>
    %17 = vector.shape_cast %16 : vector<16x32xf32> to vector<2x8x32xf32>
    %18 = vector.extract_strided_slice %13 {offsets = [0, 32], sizes = [16, 32], strides = [1, 1]} : vector<16x96xf32> to vector<16x32xf32>
    %19 = vector.shape_cast %18 : vector<16x32xf32> to vector<2x8x32xf32>
    %20 = vector.extract_strided_slice %13 {offsets = [0, 64], sizes = [16, 32], strides = [1, 1]} : vector<16x96xf32> to vector<16x32xf32>
    %21 = vector.shape_cast %20 : vector<16x32xf32> to vector<2x8x32xf32>
    %22 = vector.extract_strided_slice %17 {offsets = [0, 0, 0], sizes = [2, 8, 16], strides = [1, 1, 1]} : vector<2x8x32xf32> to vector<2x8x16xf32>
    %23 = arith.truncf %22 : vector<2x8x16xf32> to vector<2x8x16xbf16>
    %24 = vector.extract_strided_slice %19 {offsets = [0, 0, 0], sizes = [2, 8, 16], strides = [1, 1, 1]} : vector<2x8x32xf32> to vector<2x8x16xf32>
    %25 = arith.truncf %24 : vector<2x8x16xf32> to vector<2x8x16xbf16>
    %26 = vector.extract_strided_slice %21 {offsets = [0, 0, 0], sizes = [2, 8, 16], strides = [1, 1, 1]} : vector<2x8x32xf32> to vector<2x8x16xf32>
    %27 = arith.truncf %26 : vector<2x8x16xf32> to vector<2x8x16xbf16>
    "tpu.trace_start"() <{level = 10 : i32, message = "bqd,bkd->bqk"}> : () -> ()
    %cst_15 = arith.constant dense<0.000000e+00> : vector<2x8x8xf32>
    %28 = tpu.matmul %23, %25, %cst_15 {dimension_numbers = #tpu.dot_dimension_numbers<[2], [2], [1], [1], [0, 0, 0, 1, 1, 1], [0], [0]>} : vector<2x8x16xbf16>, vector<2x8x16xbf16>, vector<2x8x8xf32> -> vector<2x8x8xf32>
    "tpu.trace_stop"() : () -> ()
    %29 = vector.broadcast %5 : vector<2x1x8xf32> to vector<2x8x8xf32>
    %30 = arith.addf %28, %29 : vector<2x8x8xf32>
    %cst_16 = arith.constant dense<0xFF800000> : vector<2x8xf32>
    %31 = vector.multi_reduction <maximumf>, %30, %cst_16 [2] : vector<2x8x8xf32> to vector<2x8xf32>
    %32 = vector.shape_cast %31 : vector<2x8xf32> to vector<2x8x1xf32>
    %33 = vector.broadcast %32 : vector<2x8x1xf32> to vector<2x8x8xf32>
    %34 = arith.subf %30, %33 : vector<2x8x8xf32>
    %35 = math.exp %34 : vector<2x8x8xf32>
    %cst_17 = arith.constant dense<0.000000e+00> : vector<2x8xf32>
    %36 = vector.multi_reduction <add>, %35, %cst_17 [2] : vector<2x8x8xf32> to vector<2x8xf32>
    %37 = vector.shape_cast %36 : vector<2x8xf32> to vector<2x8x1xf32>
    %38 = tpu.reciprocal %37 {approx = true} : vector<2x8x1xf32> -> vector<2x8x1xf32>
    %39 = vector.broadcast %38 : vector<2x8x1xf32> to vector<2x8x8xf32>
    %40 = arith.mulf %35, %39 : vector<2x8x8xf32>
    %41 = arith.truncf %40 : vector<2x8x8xf32> to vector<2x8x8xbf16>
    "tpu.trace_start"() <{level = 10 : i32, message = "bqk,bkd->bqd"}> : () -> ()
    %cst_18 = arith.constant dense<0.000000e+00> : vector<2x8x16xf32>
    %42 = tpu.matmul %41, %27, %cst_18 {dimension_numbers = #tpu.dot_dimension_numbers<[2], [1], [1], [2], [0, 0, 0, 1, 1, 2], [0], [0]>} : vector<2x8x8xbf16>, vector<2x8x16xbf16>, vector<2x8x16xf32> -> vector<2x8x16xf32>
    "tpu.trace_stop"() : () -> ()
    %c0_19 = arith.constant 0 : index
    %c0_20 = arith.constant 0 : index
    %c0_21 = arith.constant 0 : index
    %43 = vector.load %arg19[%c0_19, %c0_20, %c0_21] : memref<2x8x32xf32, #tpu.memory_space<vmem>>, vector<2x8x16xf32>
    tpu.vector_store %arg19[%c0_19, %c0_20, %c0_21], %42 {strides = array<i32>} : memref<2x8x32xf32, #tpu.memory_space<vmem>>, vector<2x8x16xf32>,
    %44 = vector.extract_strided_slice %17 {offsets = [0, 0, 16], sizes = [2, 8, 16], strides = [1, 1, 1]} : vector<2x8x32xf32> to vector<2x8x16xf32>
    %45 = arith.truncf %44 : vector<2x8x16xf32> to vector<2x8x16xbf16>
    %46 = vector.extract_strided_slice %19 {offsets = [0, 0, 16], sizes = [2, 8, 16], strides = [1, 1, 1]} : vector<2x8x32xf32> to vector<2x8x16xf32>
    %47 = arith.truncf %46 : vector<2x8x16xf32> to vector<2x8x16xbf16>
    %48 = vector.extract_strided_slice %21 {offsets = [0, 0, 16], sizes = [2, 8, 16], strides = [1, 1, 1]} : vector<2x8x32xf32> to vector<2x8x16xf32>
    %49 = arith.truncf %48 : vector<2x8x16xf32> to vector<2x8x16xbf16>
    "tpu.trace_start"() <{level = 10 : i32, message = "bqd,bkd->bqk"}> : () -> ()
    %cst_22 = arith.constant dense<0.000000e+00> : vector<2x8x8xf32>
    %50 = tpu.matmul %45, %47, %cst_22 {dimension_numbers = #tpu.dot_dimension_numbers<[2], [2], [1], [1], [0, 0, 0, 1, 1, 1], [0], [0]>} : vector<2x8x16xbf16>, vector<2x8x16xbf16>, vector<2x8x8xf32> -> vector<2x8x8xf32>
    "tpu.trace_stop"() : () -> ()
    %51 = vector.broadcast %5 : vector<2x1x8xf32> to vector<2x8x8xf32>
    %52 = arith.addf %50, %51 : vector<2x8x8xf32>
    %cst_23 = arith.constant dense<0xFF800000> : vector<2x8xf32>
    %53 = vector.multi_reduction <maximumf>, %52, %cst_23 [2] : vector<2x8x8xf32> to vector<2x8xf32>
    %54 = vector.shape_cast %53 : vector<2x8xf32> to vector<2x8x1xf32>
    %55 = vector.broadcast %54 : vector<2x8x1xf32> to vector<2x8x8xf32>
    %56 = arith.subf %52, %55 : vector<2x8x8xf32>
    %57 = math.exp %56 : vector<2x8x8xf32>
    %cst_24 = arith.constant dense<0.000000e+00> : vector<2x8xf32>
    %58 = vector.multi_reduction <add>, %57, %cst_24 [2] : vector<2x8x8xf32> to vector<2x8xf32>
    %59 = vector.shape_cast %58 : vector<2x8xf32> to vector<2x8x1xf32>
    %60 = tpu.reciprocal %59 {approx = true} : vector<2x8x1xf32> -> vector<2x8x1xf32>
    %61 = vector.broadcast %60 : vector<2x8x1xf32> to vector<2x8x8xf32>
    %62 = arith.mulf %57, %61 : vector<2x8x8xf32>
    %63 = arith.truncf %62 : vector<2x8x8xf32> to vector<2x8x8xbf16>
    "tpu.trace_start"() <{level = 10 : i32, message = "bqk,bkd->bqd"}> : () -> ()
    %cst_25 = arith.constant dense<0.000000e+00> : vector<2x8x16xf32>
    %64 = tpu.matmul %63, %49, %cst_25 {dimension_numbers = #tpu.dot_dimension_numbers<[2], [1], [1], [2], [0, 0, 0, 1, 1, 2], [0], [0]>} : vector<2x8x8xbf16>, vector<2x8x16xbf16>, vector<2x8x16xf32> -> vector<2x8x16xf32>
    "tpu.trace_stop"() : () -> ()
    %c0_26 = arith.constant 0 : index
    %c0_27 = arith.constant 0 : index
    %c16 = arith.constant 16 : index
    %65 = vector.load %arg19[%c0_26, %c0_27, %c16] : memref<2x8x32xf32, #tpu.memory_space<vmem>>, vector<2x8x16xf32>
    tpu.vector_store %arg19[%c0_26, %c0_27, %c16], %64 {strides = array<i32>} : memref<2x8x32xf32, #tpu.memory_space<vmem>>, vector<2x8x16xf32>,
    %c0_28 = arith.constant 0 : index
    %c0_29 = arith.constant 0 : index
    %c0_30 = arith.constant 0 : index
    %66 = vector.load %arg19[%c0_28, %c0_29, %c0_30] : memref<2x8x32xf32, #tpu.memory_space<vmem>>, vector<2x8x32xf32>
    %67 = vector.shape_cast %66 : vector<2x8x32xf32> to vector<16x32xf32>
    %68 = arith.truncf %67 : vector<16x32xf32> to vector<16x32xbf16>
    %c0_31 = arith.constant 0 : index
    %c0_32 = arith.constant 0 : index
    %c0_33 = arith.constant 0 : index
    %c0_34 = arith.constant 0 : index
    %69 = vector.load %arg7[%c0_31, %c0_32, %c0_33, %c0_34] : memref<1x1x32x32xbf16, #tpu.memory_space<vmem>>, vector<1x1x32x32xbf16>
    %70 = vector.shape_cast %69 : vector<1x1x32x32xbf16> to vector<32x32xbf16>
    %cst_35 = arith.constant dense<0.000000e+00> : vector<16x32xf32>
    %71 = tpu.matmul %68, %70, %cst_35 {dimension_numbers = #tpu.dot_dimension_numbers<[1], [0], [0], [1], [0, 0, 1, 1], [], []>} : vector<16x32xbf16>, vector<32x32xbf16>, vector<16x32xf32> -> vector<16x32xf32>
    %c0_36 = arith.constant 0 : index
    %c0_37 = arith.constant 0 : index
    %c0_38 = arith.constant 0 : index
    %c0_39 = arith.constant 0 : index
    %72 = vector.load %arg8[%c0_36, %c0_37, %c0_38, %c0_39] : memref<1x1x1x32xf32, #tpu.memory_space<vmem>>, vector<1x1x1x32xf32>
    %73 = vector.shape_cast %72 : vector<1x1x1x32xf32> to vector<1x32xf32>
    %74 = vector.broadcast %73 : vector<1x32xf32> to vector<16x32xf32>
    %75 = arith.addf %71, %74 : vector<16x32xf32>
    %76 = arith.addf %4, %75 : vector<16x32xf32>
    %c0_40 = arith.constant 0 : index
    %c0_41 = arith.constant 0 : index
    %c0_42 = arith.constant 0 : index
    %c0_43 = arith.constant 0 : index
    %77 = vector.load %arg9[%c0_40, %c0_41, %c0_42, %c0_43] : memref<1x1x1x32xf32, #tpu.memory_space<vmem>>, vector<1x1x1x32xf32>
    %78 = vector.shape_cast %77 : vector<1x1x1x32xf32> to vector<1x32xf32>
    %c0_44 = arith.constant 0 : index
    %c0_45 = arith.constant 0 : index
    %c0_46 = arith.constant 0 : index
    %c0_47 = arith.constant 0 : index
    %79 = vector.load %arg10[%c0_44, %c0_45, %c0_46, %c0_47] : memref<1x1x1x32xf32, #tpu.memory_space<vmem>>, vector<1x1x1x32xf32>
    %80 = vector.shape_cast %79 : vector<1x1x1x32xf32> to vector<1x32xf32>
    %cst_48 = arith.constant dense<0.000000e+00> : vector<16xf32>
    %81 = vector.multi_reduction <add>, %76, %cst_48 [1] : vector<16x32xf32> to vector<16xf32>
    %82 = vector.shape_cast %81 : vector<16xf32> to vector<16x1xf32>
    %cst_49 = arith.constant 3.200000e+01 : f32
    %83 = vector.broadcast %cst_49 : f32 to vector<16x1xf32>
    %84 = arith.divf %82, %83 : vector<16x1xf32>
    %85 = vector.broadcast %84 : vector<16x1xf32> to vector<16x32xf32>
    %86 = arith.subf %76, %85 : vector<16x32xf32>
    %87 = arith.mulf %86, %86 : vector<16x32xf32>
    %cst_50 = arith.constant dense<0.000000e+00> : vector<16xf32>
    %88 = vector.multi_reduction <add>, %87, %cst_50 [1] : vector<16x32xf32> to vector<16xf32>
    %89 = vector.shape_cast %88 : vector<16xf32> to vector<16x1xf32>
    %cst_51 = arith.constant 3.200000e+01 : f32
    %90 = vector.broadcast %cst_51 : f32 to vector<16x1xf32>
    %91 = arith.divf %89, %90 : vector<16x1xf32>
    %92 = vector.broadcast %84 : vector<16x1xf32> to vector<16x32xf32>
    %93 = arith.subf %76, %92 : vector<16x32xf32>
    %cst_52 = arith.constant 9.99999974E-6 : f32
    %94 = vector.broadcast %cst_52 : f32 to vector<16x1xf32>
    %95 = arith.addf %91, %94 : vector<16x1xf32>
    %96 = math.rsqrt %95 : vector<16x1xf32>
    %97 = vector.broadcast %96 : vector<16x1xf32> to vector<16x32xf32>
    %98 = arith.mulf %93, %97 : vector<16x32xf32>
    %99 = vector.broadcast %78 : vector<1x32xf32> to vector<16x32xf32>
    %100 = arith.mulf %98, %99 : vector<16x32xf32>
    %101 = vector.broadcast %80 : vector<1x32xf32> to vector<16x32xf32>
    %102 = arith.addf %100, %101 : vector<16x32xf32>
    %103 = arith.truncf %102 : vector<16x32xf32> to vector<16x32xbf16>
    %c0_53 = arith.constant 0 : index
    %c0_54 = arith.constant 0 : index
    %c0_55 = arith.constant 0 : index
    %c0_56 = arith.constant 0 : index
    %104 = vector.load %arg11[%c0_53, %c0_54, %c0_55, %c0_56] : memref<1x1x32x64xbf16, #tpu.memory_space<vmem>>, vector<1x1x32x64xbf16>
    %105 = vector.shape_cast %104 : vector<1x1x32x64xbf16> to vector<32x64xbf16>
    %cst_57 = arith.constant dense<0.000000e+00> : vector<16x64xf32>
    %106 = tpu.matmul %103, %105, %cst_57 {dimension_numbers = #tpu.dot_dimension_numbers<[1], [0], [0], [1], [0, 0, 1, 1], [], []>} : vector<16x32xbf16>, vector<32x64xbf16>, vector<16x64xf32> -> vector<16x64xf32>
    %c0_58 = arith.constant 0 : index
    %c0_59 = arith.constant 0 : index
    %c0_60 = arith.constant 0 : index
    %c0_61 = arith.constant 0 : index
    %107 = vector.load %arg12[%c0_58, %c0_59, %c0_60, %c0_61] : memref<1x1x1x64xf32, #tpu.memory_space<vmem>>, vector<1x1x1x64xf32>
    %108 = vector.shape_cast %107 : vector<1x1x1x64xf32> to vector<1x64xf32>
    %109 = vector.broadcast %108 : vector<1x64xf32> to vector<16x64xf32>
    %110 = arith.addf %106, %109 : vector<16x64xf32>
    %cst_62 = arith.constant 0.000000e+00 : f32
    %111 = vector.broadcast %cst_62 : f32 to vector<16x64xf32>
    %112 = arith.maximumf %110, %111 : vector<16x64xf32>
    %113 = arith.truncf %112 : vector<16x64xf32> to vector<16x64xbf16>
    %c0_63 = arith.constant 0 : index
    %c0_64 = arith.constant 0 : index
    %c0_65 = arith.constant 0 : index
    %c0_66 = arith.constant 0 : index
    %114 = vector.load %arg13[%c0_63, %c0_64, %c0_65, %c0_66] : memref<1x1x64x32xbf16, #tpu.memory_space<vmem>>, vector<1x1x64x32xbf16>
    %115 = vector.shape_cast %114 : vector<1x1x64x32xbf16> to vector<64x32xbf16>
    %cst_67 = arith.constant dense<0.000000e+00> : vector<16x32xf32>
    %116 = tpu.matmul %113, %115, %cst_67 {dimension_numbers = #tpu.dot_dimension_numbers<[1], [0], [0], [1], [0, 0, 1, 1], [], []>} : vector<16x64xbf16>, vector<64x32xbf16>, vector<16x32xf32> -> vector<16x32xf32>
    %c0_68 = arith.constant 0 : index
    %c0_69 = arith.constant 0 : index
    %c0_70 = arith.constant 0 : index
    %c0_71 = arith.constant 0 : index
    %117 = vector.load %arg14[%c0_68, %c0_69, %c0_70, %c0_71] : memref<1x1x1x32xf32, #tpu.memory_space<vmem>>, vector<1x1x1x32xf32>
    %118 = vector.shape_cast %117 : vector<1x1x1x32xf32> to vector<1x32xf32>
    %119 = vector.broadcast %118 : vector<1x32xf32> to vector<16x32xf32>
    %120 = arith.addf %116, %119 : vector<16x32xf32>
    %121 = arith.addf %102, %120 : vector<16x32xf32>
    %c0_72 = arith.constant 0 : index
    %c0_73 = arith.constant 0 : index
    %c0_74 = arith.constant 0 : index
    %c0_75 = arith.constant 0 : index
    %122 = vector.load %arg15[%c0_72, %c0_73, %c0_74, %c0_75] : memref<1x1x1x32xf32, #tpu.memory_space<vmem>>, vector<1x1x1x32xf32>
    %123 = vector.shape_cast %122 : vector<1x1x1x32xf32> to vector<1x32xf32>
    %c0_76 = arith.constant 0 : index
    %c0_77 = arith.constant 0 : index
    %c0_78 = arith.constant 0 : index
    %c0_79 = arith.constant 0 : index
    %124 = vector.load %arg16[%c0_76, %c0_77, %c0_78, %c0_79] : memref<1x1x1x32xf32, #tpu.memory_space<vmem>>, vector<1x1x1x32xf32>
    %125 = vector.shape_cast %124 : vector<1x1x1x32xf32> to vector<1x32xf32>
    %cst_80 = arith.constant dense<0.000000e+00> : vector<16xf32>
    %126 = vector.multi_reduction <add>, %121, %cst_80 [1] : vector<16x32xf32> to vector<16xf32>
    %127 = vector.shape_cast %126 : vector<16xf32> to vector<16x1xf32>
    %cst_81 = arith.constant 3.200000e+01 : f32
    %128 = vector.broadcast %cst_81 : f32 to vector<16x1xf32>
    %129 = arith.divf %127, %128 : vector<16x1xf32>
    %130 = vector.broadcast %129 : vector<16x1xf32> to vector<16x32xf32>
    %131 = arith.subf %121, %130 : vector<16x32xf32>
    %132 = arith.mulf %131, %131 : vector<16x32xf32>
    %cst_82 = arith.constant dense<0.000000e+00> : vector<16xf32>
    %133 = vector.multi_reduction <add>, %132, %cst_82 [1] : vector<16x32xf32> to vector<16xf32>
    %134 = vector.shape_cast %133 : vector<16xf32> to vector<16x1xf32>
    %cst_83 = arith.constant 3.200000e+01 : f32
    %135 = vector.broadcast %cst_83 : f32 to vector<16x1xf32>
    %136 = arith.divf %134, %135 : vector<16x1xf32>
    %137 = vector.broadcast %129 : vector<16x1xf32> to vector<16x32xf32>
    %138 = arith.subf %121, %137 : vector<16x32xf32>
    %cst_84 = arith.constant 9.99999974E-6 : f32
    %139 = vector.broadcast %cst_84 : f32 to vector<16x1xf32>
    %140 = arith.addf %136, %139 : vector<16x1xf32>
    %141 = math.rsqrt %140 : vector<16x1xf32>
    %142 = vector.broadcast %141 : vector<16x1xf32> to vector<16x32xf32>
    %143 = arith.mulf %138, %142 : vector<16x32xf32>
    %144 = vector.broadcast %123 : vector<1x32xf32> to vector<16x32xf32>
    %145 = arith.mulf %143, %144 : vector<16x32xf32>
    %146 = vector.broadcast %125 : vector<1x32xf32> to vector<16x32xf32>
    %147 = arith.addf %145, %146 : vector<16x32xf32>
    %148 = vector.shape_cast %147 : vector<16x32xf32> to vector<2x8x32xf32>
    %c0_85 = arith.constant 0 : index
    %c0_86 = arith.constant 0 : index
    %c0_87 = arith.constant 0 : index
    %149 = vector.load %arg18[%c0_85, %c0_86, %c0_87] : memref<2x8x32xf32, #tpu.memory_space<vmem>>, vector<2x8x32xf32>
    tpu.vector_store %arg18[%c0_85, %c0_86, %c0_87], %148 {strides = array<i32>} : memref<2x8x32xf32, #tpu.memory_space<vmem>>, vector<2x8x32xf32>,
    %c1_i32 = arith.constant 1 : i32
    %150 = arith.cmpi eq, %arg1, %c1_i32 : i32
    %151 = arith.extui %150 : i1 to i32
    %c0_i32_88 = arith.constant 0 : i32
    %152 = arith.cmpi ne, %151, %c0_i32_88 : i32
    scf.if %152 {
      %c0_89 = arith.constant 0 : index
      %153 = memref.load %arg2[%c0_89] : memref<2xi32, #tpu.memory_space<smem>>
      %154 = tpu.iota {dimensions = array<i32: 0>} : vector<8x1xi32>
      %155 = vector.broadcast %153 : i32 to vector<8x1xi32>
      %156 = arith.cmpi eq, %154, %155 : vector<8x1xi32>
      %157 = arith.extui %156 : vector<8x1xi1> to vector<8x1xi32>
      %158 = arith.sitofp %157 : vector<8x1xi32> to vector<8x1xf32>
      %c0_90 = arith.constant 0 : index
      %c0_91 = arith.constant 0 : index
      %c0_92 = arith.constant 0 : index
      %159 = vector.load %arg18[%c0_90, %c0_91, %c0_92] : memref<2x8x32xf32, #tpu.memory_space<vmem>>, vector<1x8x32xf32>
      %160 = vector.shape_cast %159 : vector<1x8x32xf32> to vector<8x32xf32>
      %161 = vector.broadcast %158 : vector<8x1xf32> to vector<8x32xf32>
      %162 = arith.mulf %160, %161 : vector<8x32xf32>
      %cst_93 = arith.constant dense<0.000000e+00> : vector<32xf32>
      %163 = vector.multi_reduction <add>, %162, %cst_93 [0] : vector<8x32xf32> to vector<32xf32>
      %164 = vector.shape_cast %163 : vector<32xf32> to vector<1x32xf32>
      %c1 = arith.constant 1 : index
      %165 = memref.load %arg2[%c1] : memref<2xi32, #tpu.memory_space<smem>>
      %166 = tpu.iota {dimensions = array<i32: 0>} : vector<8x1xi32>
      %167 = vector.broadcast %165 : i32 to vector<8x1xi32>
      %168 = arith.cmpi eq, %166, %167 : vector<8x1xi32>
      %169 = arith.extui %168 : vector<8x1xi1> to vector<8x1xi32>
      %170 = arith.sitofp %169 : vector<8x1xi32> to vector<8x1xf32>
      %c1_94 = arith.constant 1 : index
      %c0_95 = arith.constant 0 : index
      %c0_96 = arith.constant 0 : index
      %171 = vector.load %arg18[%c1_94, %c0_95, %c0_96] : memref<2x8x32xf32, #tpu.memory_space<vmem>>, vector<1x8x32xf32>
      %172 = vector.shape_cast %171 : vector<1x8x32xf32> to vector<8x32xf32>
      %173 = vector.broadcast %170 : vector<8x1xf32> to vector<8x32xf32>
      %174 = arith.mulf %172, %173 : vector<8x32xf32>
      %cst_97 = arith.constant dense<0.000000e+00> : vector<32xf32>
      %175 = vector.multi_reduction <add>, %174, %cst_97 [0] : vector<8x32xf32> to vector<32xf32>
      %176 = vector.shape_cast %175 : vector<32xf32> to vector<1x32xf32>
      %177 = tpu.concatenate %164, %176 in 0 : vector<1x32xf32>, vector<1x32xf32> -> vector<2x32xf32>
      %c0_98 = arith.constant 0 : index
      %c0_99 = arith.constant 0 : index
      %c0_100 = arith.constant 0 : index
      %178 = vector.load %arg17[%c0_98, %c0_99, %c0_100] : memref<1x2x32xf32, #tpu.memory_space<vmem>>, vector<1x2x32xf32>
      %179 = vector.shape_cast %178 : vector<1x2x32xf32> to vector<2x32xf32>
      %180 = vector.shape_cast %177 : vector<2x32xf32> to vector<1x2x32xf32>
      tpu.vector_store %arg17[%c0_98, %c0_99, %c0_100], %180 {strides = array<i32>} : memref<1x2x32xf32, #tpu.memory_space<vmem>>, vector<1x2x32xf32>,
    } else {
    }
    return
  }
  func.func @transform_0(%arg0: i32, %arg1: i32, %arg2: memref<2xi32, #tpu.memory_space<smem>>) -> (i32, i32, i32, i32) {
    %c0_i32 = arith.constant 0 : i32
    %c0_i32_0 = arith.constant 0 : i32
    %c0_i32_1 = arith.constant 0 : i32
    %c0_i32_2 = arith.constant 0 : i32
    return %arg0, %c0_i32, %c0_i32_0, %c0_i32_1 : i32, i32, i32, i32
  }
  func.func @transform_1(%arg0: i32, %arg1: i32, %arg2: memref<2xi32, #tpu.memory_space<smem>>) -> (i32, i32, i32) {
    %c0_i32 = arith.constant 0 : i32
    %c0_i32_0 = arith.constant 0 : i32
    %c0_i32_1 = arith.constant 0 : i32
    %c0_i32_2 = arith.constant 0 : i32
    return %c0_i32, %c0_i32_0, %c0_i32_1 : i32, i32, i32
  }
  func.func @transform_2(%arg0: i32, %arg1: i32, %arg2: memref<2xi32, #tpu.memory_space<smem>>) -> (i32, i32, i32, i32) {
    %c0_i32 = arith.constant 0 : i32
    %c0_i32_0 = arith.constant 0 : i32
    %c0_i32_1 = arith.constant 0 : i32
    return %arg0, %arg1, %c0_i32, %c0_i32_0 : i32, i32, i32, i32
  }
  func.func @transform_3(%arg0: i32, %arg1: i32, %arg2: memref<2xi32, #tpu.memory_space<smem>>) -> (i32, i32, i32, i32) {
    %c0_i32 = arith.constant 0 : i32
    %c0_i32_0 = arith.constant 0 : i32
    %c0_i32_1 = arith.constant 0 : i32
    return %arg0, %arg1, %c0_i32, %c0_i32_0 : i32, i32, i32, i32
  }
  func.func @transform_4(%arg0: i32, %arg1: i32, %arg2: memref<2xi32, #tpu.memory_space<smem>>) -> (i32, i32, i32, i32) {
    %c0_i32 = arith.constant 0 : i32
    %c0_i32_0 = arith.constant 0 : i32
    %c0_i32_1 = arith.constant 0 : i32
    return %arg0, %arg1, %c0_i32, %c0_i32_0 : i32, i32, i32, i32
  }
  func.func @transform_5(%arg0: i32, %arg1: i32, %arg2: memref<2xi32, #tpu.memory_space<smem>>) -> (i32, i32, i32, i32) {
    %c0_i32 = arith.constant 0 : i32
    %c0_i32_0 = arith.constant 0 : i32
    %c0_i32_1 = arith.constant 0 : i32
    return %arg0, %arg1, %c0_i32, %c0_i32_0 : i32, i32, i32, i32
  }
  func.func @transform_6(%arg0: i32, %arg1: i32, %arg2: memref<2xi32, #tpu.memory_space<smem>>) -> (i32, i32, i32, i32) {
    %c0_i32 = arith.constant 0 : i32
    %c0_i32_0 = arith.constant 0 : i32
    %c0_i32_1 = arith.constant 0 : i32
    return %arg0, %arg1, %c0_i32, %c0_i32_0 : i32, i32, i32, i32
  }
  func.func @transform_7(%arg0: i32, %arg1: i32, %arg2: memref<2xi32, #tpu.memory_space<smem>>) -> (i32, i32, i32, i32) {
    %c0_i32 = arith.constant 0 : i32
    %c0_i32_0 = arith.constant 0 : i32
    %c0_i32_1 = arith.constant 0 : i32
    return %arg0, %arg1, %c0_i32, %c0_i32_0 : i32, i32, i32, i32
  }
  func.func @transform_8(%arg0: i32, %arg1: i32, %arg2: memref<2xi32, #tpu.memory_space<smem>>) -> (i32, i32, i32, i32) {
    %c0_i32 = arith.constant 0 : i32
    %c0_i32_0 = arith.constant 0 : i32
    %c0_i32_1 = arith.constant 0 : i32
    return %arg0, %arg1, %c0_i32, %c0_i32_0 : i32, i32, i32, i32
  }
  func.func @transform_9(%arg0: i32, %arg1: i32, %arg2: memref<2xi32, #tpu.memory_space<smem>>) -> (i32, i32, i32, i32) {
    %c0_i32 = arith.constant 0 : i32
    %c0_i32_0 = arith.constant 0 : i32
    %c0_i32_1 = arith.constant 0 : i32
    return %arg0, %arg1, %c0_i32, %c0_i32_0 : i32, i32, i32, i32
  }
  func.func @transform_10(%arg0: i32, %arg1: i32, %arg2: memref<2xi32, #tpu.memory_space<smem>>) -> (i32, i32, i32, i32) {
    %c0_i32 = arith.constant 0 : i32
    %c0_i32_0 = arith.constant 0 : i32
    %c0_i32_1 = arith.constant 0 : i32
    return %arg0, %arg1, %c0_i32, %c0_i32_0 : i32, i32, i32, i32
  }
  func.func @transform_11(%arg0: i32, %arg1: i32, %arg2: memref<2xi32, #tpu.memory_space<smem>>) -> (i32, i32, i32, i32) {
    %c0_i32 = arith.constant 0 : i32
    %c0_i32_0 = arith.constant 0 : i32
    %c0_i32_1 = arith.constant 0 : i32
    return %arg0, %arg1, %c0_i32, %c0_i32_0 : i32, i32, i32, i32
  }
  func.func @transform_12(%arg0: i32, %arg1: i32, %arg2: memref<2xi32, #tpu.memory_space<smem>>) -> (i32, i32, i32, i32) {
    %c0_i32 = arith.constant 0 : i32
    %c0_i32_0 = arith.constant 0 : i32
    %c0_i32_1 = arith.constant 0 : i32
    return %arg0, %arg1, %c0_i32, %c0_i32_0 : i32, i32, i32, i32
  }
  func.func @transform_13(%arg0: i32, %arg1: i32, %arg2: memref<2xi32, #tpu.memory_space<smem>>) -> (i32, i32, i32, i32) {
    %c0_i32 = arith.constant 0 : i32
    %c0_i32_0 = arith.constant 0 : i32
    %c0_i32_1 = arith.constant 0 : i32
    return %arg0, %arg1, %c0_i32, %c0_i32_0 : i32, i32, i32, i32
  }
  func.func @transform_14(%arg0: i32, %arg1: i32, %arg2: memref<2xi32, #tpu.memory_space<smem>>) -> (i32, i32, i32) {
    %c0_i32 = arith.constant 0 : i32
    %c0_i32_0 = arith.constant 0 : i32
    %c0_i32_1 = arith.constant 0 : i32
    return %arg0, %c0_i32, %c0_i32_0 : i32, i32, i32
  }
}

module attributes {stable_mosaic.version = 11 : i64} {
  func.func @_head_kernel(%arg0: i32, %arg1: memref<8x64xf32, #tpu.memory_space<vmem>>, %arg2: memref<64x32xbf16, #tpu.memory_space<vmem>>, %arg3: memref<1x32xf32, #tpu.memory_space<vmem>>, %arg4: memref<128x32xbf16, #tpu.memory_space<vmem>>, %arg5: memref<8x128xf32, #tpu.memory_space<vmem>>, %arg6: memref<8x32xbf16, #tpu.memory_space<vmem>>) attributes {dimension_semantics = [#tpu.dimension_semantics<arbitrary>], iteration_bounds = array<i64: 1>, scalar_prefetch = 0 : i64, scratch_operands = 1 : i64, tpu.core_type = #tpu.core_type<tc>, window_params = [{pipeline_mode = #tpu.pipeline_mode<synchronous>, transform_indices = @transform_0, window_bounds = array<i64: 8, 64>}, {pipeline_mode = #tpu.pipeline_mode<synchronous>, transform_indices = @transform_1, window_bounds = array<i64: 64, 32>}, {pipeline_mode = #tpu.pipeline_mode<synchronous>, transform_indices = @transform_2, window_bounds = array<i64: 1, 32>}, {transform_indices = @transform_3, window_bounds = array<i64: 128, 32>}, {transform_indices = @transform_4, window_bounds = array<i64: 8, 128>}]} {
    %c0_i32 = arith.constant 0 : i32
    %0 = arith.cmpi eq, %arg0, %c0_i32 : i32
    %1 = arith.extui %0 : i1 to i32
    %c0_i32_0 = arith.constant 0 : i32
    %2 = arith.cmpi ne, %1, %c0_i32_0 : i32
    scf.if %2 {
      %c0_6 = arith.constant 0 : index
      %c0_7 = arith.constant 0 : index
      %7 = vector.load %arg1[%c0_6, %c0_7] : memref<8x64xf32, #tpu.memory_space<vmem>>, vector<8x64xf32>
      %8 = arith.truncf %7 : vector<8x64xf32> to vector<8x64xbf16>
      %c0_8 = arith.constant 0 : index
      %c0_9 = arith.constant 0 : index
      %9 = vector.load %arg2[%c0_8, %c0_9] : memref<64x32xbf16, #tpu.memory_space<vmem>>, vector<64x32xbf16>
      %cst_10 = arith.constant dense<0.000000e+00> : vector<8x32xf32>
      %10 = tpu.matmul %8, %9, %cst_10 {dimension_numbers = #tpu.dot_dimension_numbers<[1], [0], [0], [1], [0, 0, 1, 1], [], []>} : vector<8x64xbf16>, vector<64x32xbf16>, vector<8x32xf32> -> vector<8x32xf32>
      %c0_11 = arith.constant 0 : index
      %c0_12 = arith.constant 0 : index
      %11 = vector.load %arg3[%c0_11, %c0_12] : memref<1x32xf32, #tpu.memory_space<vmem>>, vector<1x32xf32>
      %12 = vector.broadcast %11 : vector<1x32xf32> to vector<8x32xf32>
      %13 = arith.addf %10, %12 : vector<8x32xf32>
      %14 = arith.truncf %13 : vector<8x32xf32> to vector<8x32xbf16>
      %c0_13 = arith.constant 0 : index
      %c0_14 = arith.constant 0 : index
      %15 = vector.load %arg6[%c0_13, %c0_14] : memref<8x32xbf16, #tpu.memory_space<vmem>>, vector<8x32xbf16>
      tpu.vector_store %arg6[%c0_13, %c0_14], %14 {strides = array<i32>} : memref<8x32xbf16, #tpu.memory_space<vmem>>, vector<8x32xbf16>,
    } else {
    }
    %c0 = arith.constant 0 : index
    %c0_1 = arith.constant 0 : index
    %3 = vector.load %arg6[%c0, %c0_1] : memref<8x32xbf16, #tpu.memory_space<vmem>>, vector<8x32xbf16>
    %c0_2 = arith.constant 0 : index
    %c0_3 = arith.constant 0 : index
    %4 = vector.load %arg4[%c0_2, %c0_3] : memref<128x32xbf16, #tpu.memory_space<vmem>>, vector<128x32xbf16>
    %cst = arith.constant dense<0.000000e+00> : vector<8x128xf32>
    %5 = tpu.matmul %3, %4, %cst {dimension_numbers = #tpu.dot_dimension_numbers<[1], [1], [0], [0], [0, 0, 1, 0], [], []>} : vector<8x32xbf16>, vector<128x32xbf16>, vector<8x128xf32> -> vector<8x128xf32>
    %c0_4 = arith.constant 0 : index
    %c0_5 = arith.constant 0 : index
    %6 = vector.load %arg5[%c0_4, %c0_5] : memref<8x128xf32, #tpu.memory_space<vmem>>, vector<8x128xf32>
    tpu.vector_store %arg5[%c0_4, %c0_5], %5 {strides = array<i32>} : memref<8x128xf32, #tpu.memory_space<vmem>>, vector<8x128xf32>,
    return
  }
  func.func @transform_0(%arg0: i32) -> (i32, i32) {
    %c0_i32 = arith.constant 0 : i32
    %c0_i32_0 = arith.constant 0 : i32
    %c0_i32_1 = arith.constant 0 : i32
    return %c0_i32, %c0_i32_0 : i32, i32
  }
  func.func @transform_1(%arg0: i32) -> (i32, i32) {
    %c0_i32 = arith.constant 0 : i32
    %c0_i32_0 = arith.constant 0 : i32
    %c0_i32_1 = arith.constant 0 : i32
    return %c0_i32, %c0_i32_0 : i32, i32
  }
  func.func @transform_2(%arg0: i32) -> (i32, i32) {
    %c0_i32 = arith.constant 0 : i32
    %c0_i32_0 = arith.constant 0 : i32
    %c0_i32_1 = arith.constant 0 : i32
    return %c0_i32, %c0_i32_0 : i32, i32
  }
  func.func @transform_3(%arg0: i32) -> (i32, i32) {
    %c0_i32 = arith.constant 0 : i32
    %c0_i32_0 = arith.constant 0 : i32
    return %arg0, %c0_i32 : i32, i32
  }
  func.func @transform_4(%arg0: i32) -> (i32, i32) {
    %c0_i32 = arith.constant 0 : i32
    %c0_i32_0 = arith.constant 0 : i32
    return %c0_i32, %arg0 : i32, i32
  }
}

</mosaic_0001>

<llo_original>
// kernel: fdsa_forward.3
$region0: #{fdsa_forward.3}
  #allocation0 [shape = 'u32[]', space=smem, size = 0x4, offset = 0x4, fixed_abs, tag = 'smem constant byte address 0x4 - core index']
  #allocation1 [shape = 'u32[144,128]{1,0:T(1,128)}', space=vmem, size = 0x12000, scoped, tag = 'internal scratch']
  #allocation2 [shape = 'bf16[8,32]{1,0:T(8,128)(2,1)}', space=vmem, size = 0x800, scoped, tag = 'scratch operand']
  %s0 = inlined_call_operand.vmem [shape: f32[8,64], index: 0, kind: input, shape index: {}]
  %s1 = inlined_call_operand.vmem [shape: bf16[64,32], index: 1, kind: input, shape index: {}]
  %s2 = inlined_call_operand.vmem [shape: f32[1,32], index: 2, kind: input, shape index: {}]
  %s3 = inlined_call_operand.vmem [shape: bf16[128,32], index: 3, kind: input, shape index: {}]
  %s4 = inlined_call_operand.vmem [shape: f32[8,128], index: 4, kind: output, shape index: {}]
  %s5 = sld [smem:[#allocation0]]
  $region30: #{fdsa_forward.3} parent=0
    _
  %s7 = ssub.s32 1, %s5
  %s8 = scalar_select 0, %s7, %s5
  // Predicated region
  $region2: #{fdsa_forward.3} parent=0 // pred_check
    _
  $region3: #{fdsa_forward.3} parent=0 // pred_check_branch
    %10 = sbr.rel (0) target = $region5
  $region4: #{fdsa_forward.3} parent=0 // pred_region
    _
  $region5: #{fdsa_forward.3} parent=0 // pred_fallthru
    _
  // Predicated region
  $region6: #{fdsa_forward.3} parent=0 // pred_check
    _
  $region7: #{fdsa_forward.3} parent=0 // pred_check_branch
    %12 = sbr.rel (0) target = $region9
  $region8: #{fdsa_forward.3} parent=0 // pred_region
    _
  $region9: #{fdsa_forward.3} parent=0 // pred_fallthru
    _
  // Predicated region
  $region10: #{fdsa_forward.3} parent=0 // pred_check
    _
  $region11: #{fdsa_forward.3} parent=0 // pred_check_branch
    %14 = sbr.rel (0) target = $region13
  $region12: #{fdsa_forward.3} parent=0 // pred_region
    _
  $region13: #{fdsa_forward.3} parent=0 // pred_fallthru
    _
  // Predicated region
  $region14: #{fdsa_forward.3} parent=0 // pred_check
    _
  $region15: #{fdsa_forward.3} parent=0 // pred_check_branch
    %16 = sbr.rel (0) target = $region17
  $region16: #{fdsa_forward.3} parent=0 // pred_region
    _
  $region17: #{fdsa_forward.3} parent=0 // pred_fallthru
    _
  %p18 = scmp.eq.s32.totalorder 0, 0
  // Predicated region
  $region18: #{fdsa_forward.3} parent=0 // pred_check
    %p19 = pneg %p18
  $region19: #{fdsa_forward.3} parent=0 // pred_check_branch
    %21 = sbr.rel (%p19) target = $region21
  $region20: #{fdsa_forward.3} parent=0 // pred_region
    %v22 = vld [vmem:[%s0] sm:$0xff]
    %v23 = vpack.c.bf16 %v22, %v22
    %v24 = vld [vmem:[%s1] sm:$0xf]
    %v25 = vld [vmem:[%s1 + $0x4] sm:$0xf]
    %v26 = vld [vmem:[%s1 + $0x8] sm:$0xf]
    %v27 = vld [vmem:[%s1 + $0xc] sm:$0xf]
    %v28 = vld [vmem:[%s1 + $0x10] sm:$0xf]
    %v29 = vld [vmem:[%s1 + $0x14] sm:$0xf]
    %v30 = vld [vmem:[%s1 + $0x18] sm:$0xf]
    %v31 = vld [vmem:[%s1 + $0x1c] sm:$0xf]
    %v32 = vld [vmem:[%s2] sm:$0x1]
    %v34 = vlaneseq
    %v35 = vshrl.u32 %v34, 7
    %v36 = vsub.s32 0, %v35
    %v37 = vrot.slane %v32, %v36
    %v47 = vunpack.c.l.b16 %v24
    %v48 = vunpack.c.l.b16 %v25
    %v49 = vunpack.c.l.b16 %v26
    %v50 = vunpack.c.l.b16 %v27
    %v51 = vunpack.c.l.b16 %v28
    %v52 = vunpack.c.l.b16 %v29
    %v53 = vunpack.c.l.b16 %v30
    %v54 = vunpack.c.l.b16 %v31
    %v55 = vpack.c.b16 %v48, %v47
    %v56 = vpack.c.b16 %v50, %v49
    %v57 = vpack.c.b16 %v52, %v51
    %v58 = vpack.c.b16 %v54, %v53
    %vm63 = vcmask 523264
    %v65 = vsel %vm63, %v23, 0
    %67 = vmatprep.subr.bf16.mxu0 0
    %68 = vmatpush1.bf16.msra.mxu0 %v55
    %69 = vmatprep.subr.bf16.mxu0 0
    %70 = vmatpush1.bf16.msra.mxu0 %v56
    %71 = vmatprep.subr.bf16.mxu0 0
    %72 = vmatpush1.bf16.msra.mxu0 %v57
    %73 = vmatprep.subr.bf16.mxu0 0
    %74 = vmatpush1.bf16.msra.mxu0 %v58
    %75 = vmatprep.subr.bf16.mxu0 0
    %76 = vmatpush1.bf16.msra.mxu0 0
    %77 = vmatprep.subr.bf16.mxu0 0
    %78 = vmatpush1.bf16.msra.mxu0 0
    %79 = vmatprep.subr.bf16.mxu0 0
    %80 = vmatpush1.bf16.msra.mxu0 0
    %81 = vmatprep.subr.bf16.mxu0 0
    %82 = vmatpush1.bf16.msra.mxu0 0
    %83 = vmatprep.subr.bf16.mxu0 0
    %84 = vmatpush1.bf16.msra.mxu0 0
    %85 = vmatprep.subr.bf16.mxu0 0
    %86 = vmatpush1.bf16.msra.mxu0 0
    %87 = vmatprep.subr.bf16.mxu0 0
    %88 = vmatpush1.bf16.msra.mxu0 0
    %89 = vmatprep.subr.bf16.mxu0 0
    %90 = vmatpush1.bf16.msra.mxu0 0
    %91 = vmatprep.subr.bf16.mxu0 0
    %92 = vmatpush1.bf16.msra.mxu0 0
    %93 = vmatprep.subr.bf16.mxu0 0
    %94 = vmatpush1.bf16.msra.mxu0 0
    %95 = vmatprep.subr.bf16.mxu0 0
    %96 = vmatpush1.bf16.msra.mxu0 0
    %97 = vmatprep.subr.bf16.mxu0 0
    %98 = vmatpush1.bf16.msra.mxu0 0
    %99 = vmatprep.mubr.bf16.mxu0 0
    %100 = vmatmul.mubr.bf16.gmra.mrb[0].mxu0 %v65
    %v101 = vpop.f32.mrb[0].mxu0
    %v102 = vadd.f32 %v37, %v101
    %v103 = vpop.f32.mrb[0].mxu0
    %v104 = vpop.f32.mrb[0].mxu0
    %v105 = vpop.f32.mrb[0].mxu0
    %106 = vdwg.mxu0
    %v107 = vpack.c.bf16 %v102, %v102
    %vm108 = vcmask 257024
    %109 = vst.msk [vmem:[#allocation2] sm:$0xf] %vm108, %v107
  $region21: #{fdsa_forward.3} parent=0 // pred_fallthru
    _
  %v110 = vld [vmem:[#allocation2] sm:$0xf]
  %v111 = vld [vmem:[%s3] sm:$0xf]
  %v112 = vld [vmem:[%s3 + $0x4] sm:$0xf]
  %v113 = vld [vmem:[%s3 + $0x8] sm:$0xf]
  %v114 = vld [vmem:[%s3 + $0xc] sm:$0xf]
  %v115 = vld [vmem:[%s3 + $0x10] sm:$0xf]
  %v116 = vld [vmem:[%s3 + $0x14] sm:$0xf]
  %v117 = vld [vmem:[%s3 + $0x18] sm:$0xf]
  %v118 = vld [vmem:[%s3 + $0x1c] sm:$0xf]
  %v119 = vld [vmem:[%s3 + $0x20] sm:$0xf]
  %v120 = vld [vmem:[%s3 + $0x24] sm:$0xf]
  %v121 = vld [vmem:[%s3 + $0x28] sm:$0xf]
  %v122 = vld [vmem:[%s3 + $0x2c] sm:$0xf]
  %v123 = vld [vmem:[%s3 + $0x30] sm:$0xf]
  %v124 = vld [vmem:[%s3 + $0x34] sm:$0xf]
  %v125 = vld [vmem:[%s3 + $0x38] sm:$0xf]
  %v126 = vld [vmem:[%s3 + $0x3c] sm:$0xf]
  %v143 = vunpack.c.l.b16 %v111
  %v144 = vunpack.c.l.b16 %v112
  %v145 = vunpack.c.l.b16 %v113
  %v146 = vunpack.c.l.b16 %v114
  %v147 = vunpack.c.l.b16 %v115
  %v148 = vunpack.c.l.b16 %v116
  %v149 = vunpack.c.l.b16 %v117
  %v150 = vunpack.c.l.b16 %v118
  %v151 = vunpack.c.l.b16 %v119
  %v152 = vunpack.c.l.b16 %v120
  %v153 = vunpack.c.l.b16 %v121
  %v154 = vunpack.c.l.b16 %v122
  %v155 = vunpack.c.l.b16 %v123
  %v156 = vunpack.c.l.b16 %v124
  %v157 = vunpack.c.l.b16 %v125
  %v158 = vunpack.c.l.b16 %v126
  %v159 = vpack.c.b16 %v144, %v143
  %v160 = vpack.c.b16 %v146, %v145
  %v161 = vpack.c.b16 %v148, %v147
  %v162 = vpack.c.b16 %v150, %v149
  %v163 = vpack.c.b16 %v152, %v151
  %v164 = vpack.c.b16 %v154, %v153
  %v165 = vpack.c.b16 %v156, %v155
  %v166 = vpack.c.b16 %v158, %v157
  %vm167 = vcmask 261120
  %v169 = vsel %vm167, %v110, 0
  %v172 = vsel %vm167, %v159, 0
  %v175 = vsel %vm167, %v160, 0
  %v178 = vsel %vm167, %v161, 0
  %v181 = vsel %vm167, %v162, 0
  %v184 = vsel %vm167, %v163, 0
  %v187 = vsel %vm167, %v164, 0
  %v190 = vsel %vm167, %v165, 0
  %v193 = vsel %vm167, %v166, 0
  %195 = vmatprep.subr.bf16.mxu0 0
  %196 = vmatpush1.bf16.xpose.msra.mxu0 %v172
  %197 = vmatprep.subr.bf16.mxu0 0
  %198 = vmatpush1.bf16.xpose.msra.mxu0 %v175
  %199 = vmatprep.subr.bf16.mxu0 0
  %200 = vmatpush1.bf16.xpose.msra.mxu0 %v178
  %201 = vmatprep.subr.bf16.mxu0 0
  %202 = vmatpush1.bf16.xpose.msra.mxu0 %v181
  %203 = vmatprep.subr.bf16.mxu0 0
  %204 = vmatpush1.bf16.xpose.msra.mxu0 %v184
  %205 = vmatprep.subr.bf16.mxu0 0
  %206 = vmatpush1.bf16.xpose.msra.mxu0 %v187
  %207 = vmatprep.subr.bf16.mxu0 0
  %208 = vmatpush1.bf16.xpose.msra.mxu0 %v190
  %209 = vmatprep.subr.bf16.mxu0 0
  %210 = vmatpush1.bf16.xpose.msra.mxu0 %v193
  %211 = vmatprep.subr.bf16.mxu0 0
  %212 = vmatpush1.bf16.xpose.msra.mxu0 0
  %213 = vmatprep.subr.bf16.mxu0 0
  %214 = vmatpush1.bf16.xpose.msra.mxu0 0
  %215 = vmatprep.subr.bf16.mxu0 0
  %216 = vmatpush1.bf16.xpose.msra.mxu0 0
  %217 = vmatprep.subr.bf16.mxu0 0
  %218 = vmatpush1.bf16.xpose.msra.mxu0 0
  %219 = vmatprep.subr.bf16.mxu0 0
  %220 = vmatpush1.bf16.xpose.msra.mxu0 0
  %221 = vmatprep.subr.bf16.mxu0 0
  %222 = vmatpush1.bf16.xpose.msra.mxu0 0
  %223 = vmatprep.subr.bf16.mxu0 0
  %224 = vmatpush1.bf16.xpose.msra.mxu0 0
  %225 = vmatprep.subr.bf16.mxu0 0
  %226 = vmatpush1.bf16.xpose.msra.mxu0 0
  %227 = vmatprep.mubr.bf16.mxu0 0
  %228 = vmatmul.mubr.bf16.gmra.mrb[0].mxu0 %v169
  %v229 = vpop.f32.mrb[0].mxu0
  %v230 = vadd.f32 0.0, %v229
  %v231 = vpop.f32.mrb[0].mxu0
  %v232 = vpop.f32.mrb[0].mxu0
  %v233 = vpop.f32.mrb[0].mxu0
  %234 = vdwg.mxu0
  %235 = vst [vmem:[%s4] sm:$0xff] %v230
  // Predicated region
  $region22: #{fdsa_forward.3} parent=0 // pred_check
    _
  $region23: #{fdsa_forward.3} parent=0 // pred_check_branch
    %237 = sbr.rel (0) target = $region25
  $region24: #{fdsa_forward.3} parent=0 // pred_region
    _
  $region25: #{fdsa_forward.3} parent=0 // pred_fallthru
    _
  // Predicated region
  $region26: #{fdsa_forward.3} parent=0 // pred_check
    _
  $region27: #{fdsa_forward.3} parent=0 // pred_check_branch
    %239 = sbr.rel (0) target = $region29
  $region28: #{fdsa_forward.3} parent=0 // pred_region
    _
  $region29: #{fdsa_forward.3} parent=0 // pred_fallthru
    _

// kernel: fdsa_forward.2
$region0: #{fdsa_forward.2}
  #allocation0 [shape = 'u32[]', space=smem, size = 0x4, offset = 0x4, fixed_abs, tag = 'smem constant byte address 0x4 - core index']
  #allocation1 [shape = 'u32[144,128]{1,0:T(1,128)}', space=vmem, size = 0x12000, scoped, tag = 'internal scratch']
  #allocation2 [shape = 'f32[2,8,32]{2,1,0:T(8,128)}', space=vmem, size = 0x2000, scoped, tag = 'scratch operand']
  #allocation3 [shape = 'f32[2,8,32]{2,1,0:T(8,128)}', space=vmem, size = 0x2000, scoped, tag = 'scratch operand']
  #allocation4 [shape = 's32[1]{0}', space=sflag, size = 0x4, scoped, tag = 'scoped memory for fdsa_forward.2']
  #allocation5 [shape = 'u8[512]{0}', space=smem, size = 0x200, scoped, tag = 'prefetched SMEM operand 0']
  %s0 = inlined_call_operand.vmem [shape: s32[2], index: 0, kind: input, shape index: {}]
  %s1 = inlined_call_operand.vmem [shape: f32[2,2,8,32], index: 1, kind: input, shape index: {}]
  %s2 = inlined_call_operand.vmem [shape: f32[2,1,8], index: 2, kind: input, shape index: {}]
  %s3 = inlined_call_operand.vmem [shape: bf16[2,2,32,96], index: 3, kind: input, shape index: {}]
  %s4 = inlined_call_operand.vmem [shape: f32[2,2,1,96], index: 4, kind: input, shape index: {}]
  %s5 = inlined_call_operand.vmem [shape: bf16[2,2,32,32], index: 5, kind: input, shape index: {}]
  %s6 = inlined_call_operand.vmem [shape: f32[2,2,1,32], index: 6, kind: input, shape index: {}]
  %s7 = inlined_call_operand.vmem [shape: f32[2,2,1,32], index: 7, kind: input, shape index: {}]
  %s8 = inlined_call_operand.vmem [shape: f32[2,2,1,32], index: 8, kind: input, shape index: {}]
  %s9 = inlined_call_operand.vmem [shape: bf16[2,2,32,64], index: 9, kind: input, shape index: {}]
  %s10 = inlined_call_operand.vmem [shape: f32[2,2,1,64], index: 10, kind: input, shape index: {}]
  %s11 = inlined_call_operand.vmem [shape: bf16[2,2,64,32], index: 11, kind: input, shape index: {}]
  %s12 = inlined_call_operand.vmem [shape: f32[2,2,1,32], index: 12, kind: input, shape index: {}]
  %s13 = inlined_call_operand.vmem [shape: f32[2,2,1,32], index: 13, kind: input, shape index: {}]
  %s14 = inlined_call_operand.vmem [shape: f32[2,2,1,32], index: 14, kind: input, shape index: {}]
  %s15 = inlined_call_operand.vmem [shape: f32[2,2,32], index: 15, kind: output, shape index: {}]
  %s16 = sld [smem:[#allocation0]]
  $region97: #{fdsa_forward.2} parent=0
    _
  %s18 = ssub.s32 1, %s16
  %s19 = scalar_select 0, %s18, %s16
  %s20 = sshll.u32 %s0, 4
  %s21 = int_to_ptr.vmem [resolvable:$true] %s20
  %23 = dma.vmem_to_smem %s21, 16, [#allocation5], [#allocation4]
  %24 = dma.done [#allocation4], 16
  %25 = sfence
  loop: start=0, step=1, limit=6
  $region2: #{fdsa_forward.2} parent=0 // loop_pre_header
    _
  $region3: #{fdsa_forward.2} parent=0 // loop_header
    %s27 = sphi 0, %s31
    %p28 = scmp.ge.s32.totalorder %s27, 6
    %s34 = sphi 0, %s46
    %s35 = sphi 0, %s42
    %s36 = sphi 0, %s34
    %s37 = sphi 0, %s35
    %s38 = sphi 0, %s36
    %s39 = sphi 0, %s37
    %s49 = sphi 0, %s51
    %s52 = sphi 0, %s49
    %s53 = sphi 0, %s52
    %s69 = sphi 0, %s53
    %s73 = sphi 0, %s73
    %s75 = sphi 0, %s73
    %s76 = sphi 0, %s75
    %s90 = sphi 0, %s76
    %s98 = sphi 0, %s100
    %s101 = sphi 0, %s98
    %s102 = sphi 0, %s101
    %s118 = sphi 0, %s102
    %s126 = sphi 0, %s128
    %s129 = sphi 0, %s126
    %s130 = sphi 0, %s129
    %s146 = sphi 0, %s130
    %s154 = sphi 0, %s156
    %s157 = sphi 0, %s154
    %s158 = sphi 0, %s157
    %s174 = sphi 0, %s158
    %s182 = sphi 0, %s184
    %s185 = sphi 0, %s182
    %s186 = sphi 0, %s185
    %s202 = sphi 0, %s186
    %s210 = sphi 0, %s212
    %s213 = sphi 0, %s210
    %s214 = sphi 0, %s213
    %s230 = sphi 0, %s214
    %s238 = sphi 0, %s240
    %s241 = sphi 0, %s238
    %s242 = sphi 0, %s241
    %s258 = sphi 0, %s242
    %s266 = sphi 0, %s268
    %s269 = sphi 0, %s266
    %s270 = sphi 0, %s269
    %s286 = sphi 0, %s270
    %s294 = sphi 0, %s296
    %s297 = sphi 0, %s294
    %s298 = sphi 0, %s297
    %s314 = sphi 0, %s298
    %s322 = sphi 0, %s324
    %s325 = sphi 0, %s322
    %s326 = sphi 0, %s325
    %s342 = sphi 0, %s326
    %s350 = sphi 0, %s352
    %s353 = sphi 0, %s350
    %s354 = sphi 0, %s353
    %s370 = sphi 0, %s354
    %s378 = sphi 0, %s380
    %s381 = sphi 0, %s378
    %s382 = sphi 0, %s381
    %s398 = sphi 0, %s382
    %s406 = sphi 0, %s408
    %s409 = sphi 0, %s406
    %s410 = sphi 0, %s409
    %s426 = sphi 0, %s410
    %s432 = sphi 0, %s434
    %s435 = sphi 0, %s432
    %s436 = sphi 0, %s435
    %s452 = sphi 0, %s436
  $region4: #{fdsa_forward.2} parent=0 // loop_header_branch
    %30 = sbr.rel (%p28) target = $region8
  $region5: #{fdsa_forward.2} parent=0 // loop_body
    %s32 = ssub.s32 %s27, 1
    %s33 = ssub.s32 %s27, 2
    %s40 = sadd.s32 1, %s35
    %p41 = scmp.ge.s32.totalorder %s40, 2
    %s42 = scalar_select %p41, 0, %s40
    %s43 = sadd.s32 1, %s34
    %s44 = scalar_select %p41, %s43, %s34
    %p45 = scmp.ge.s32.totalorder %s44, 2
    %s46 = scalar_select %p45, 0, %s44
    %s47 = ssub.s32 %s34, %s46
    %p48 = scmp.eq.s32.totalorder %s47, 0
    %s50 = sadd.s32 %s49, 1
    %s51 = scalar_select %p48, %s49, %s50
    %p54 = pneg %p48
    %p55 = scmp.eq.s32.totalorder %s27, 3
    %p56 = por %p54, %p55
    %p57 = scmp.ne.s32.totalorder %s49, %s52
    %p58 = scmp.eq.s32.totalorder %s27, 0
    %p59 = por %p57, %p58
    %p60 = scmp.ne.s32.totalorder %s49, %s52
    %p61 = scmp.eq.s32.totalorder %s32, 3
    %p62 = por %p60, %p61
    %p63 = scmp.ne.s32.totalorder %s52, %s53
    %p64 = scmp.eq.s32.totalorder %s32, 0
    %p65 = por %p63, %p64
    %p66 = scmp.ne.s32.totalorder %s52, %s53
    %p67 = scmp.eq.s32.totalorder %s33, 3
    %p68 = por %p66, %p67
    %p70 = scmp.ne.s32.totalorder %s53, %s69
    %p71 = scmp.eq.s32.totalorder %s33, 0
    %p72 = por %p70, %p71
    %s74 = sadd.s32 %s73, 1
    %p77 = scmp.eq.s32.totalorder %s27, 3
    %p78 = scmp.ne.s32.totalorder %s73, %s75
    %p79 = scmp.eq.s32.totalorder %s27, 0
    %p80 = por %p78, %p79
    %p81 = scmp.ne.s32.totalorder %s73, %s75
    %p82 = scmp.eq.s32.totalorder %s32, 3
    %p83 = por %p81, %p82
    %p84 = scmp.ne.s32.totalorder %s75, %s76
    %p85 = scmp.eq.s32.totalorder %s32, 0
    %p86 = por %p84, %p85
    %p87 = scmp.ne.s32.totalorder %s75, %s76
    %p88 = scmp.eq.s32.totalorder %s33, 3
    %p89 = por %p87, %p88
    %p91 = scmp.ne.s32.totalorder %s76, %s90
    %p92 = scmp.eq.s32.totalorder %s33, 0
    %p93 = por %p91, %p92
    %s94 = ssub.s32 %s34, %s46
    %s95 = ssub.s32 %s35, %s42
    %s96 = sor.u32 %s94, %s95
    %p97 = scmp.eq.s32.totalorder %s96, 0
    %s99 = sadd.s32 %s98, 1
    %s100 = scalar_select %p97, %s98, %s99
    %p103 = pneg %p97
    %p104 = scmp.eq.s32.totalorder %s27, 3
    %p105 = por %p103, %p104
    %p106 = scmp.ne.s32.totalorder %s98, %s101
    %p107 = scmp.eq.s32.totalorder %s27, 0
    %p108 = por %p106, %p107
    %p109 = scmp.ne.s32.totalorder %s98, %s101
    %p110 = scmp.eq.s32.totalorder %s32, 3
    %p111 = por %p109, %p110
    %p112 = scmp.ne.s32.totalorder %s101, %s102
    %p113 = scmp.eq.s32.totalorder %s32, 0
    %p114 = por %p112, %p113
    %p115 = scmp.ne.s32.totalorder %s101, %s102
    %p116 = scmp.eq.s32.totalorder %s33, 3
    %p117 = por %p115, %p116
    %p119 = scmp.ne.s32.totalorder %s102, %s118
    %p120 = scmp.eq.s32.totalorder %s33, 0
    %p121 = por %p119, %p120
    %s122 = ssub.s32 %s34, %s46
    %s123 = ssub.s32 %s35, %s42
    %s124 = sor.u32 %s122, %s123
    %p125 = scmp.eq.s32.totalorder %s124, 0
    %s127 = sadd.s32 %s126, 1
    %s128 = scalar_select %p125, %s126, %s127
    %p131 = pneg %p125
    %p132 = scmp.eq.s32.totalorder %s27, 3
    %p133 = por %p131, %p132
    %p134 = scmp.ne.s32.totalorder %s126, %s129
    %p135 = scmp.eq.s32.totalorder %s27, 0
    %p136 = por %p134, %p135
    %p137 = scmp.ne.s32.totalorder %s126, %s129
    %p138 = scmp.eq.s32.totalorder %s32, 3
    %p139 = por %p137, %p138
    %p140 = scmp.ne.s32.totalorder %s129, %s130
    %p141 = scmp.eq.s32.totalorder %s32, 0
    %p142 = por %p140, %p141
    %p143 = scmp.ne.s32.totalorder %s129, %s130
    %p144 = scmp.eq.s32.totalorder %s33, 3
    %p145 = por %p143, %p144
    %p147 = scmp.ne.s32.totalorder %s130, %s146
    %p148 = scmp.eq.s32.totalorder %s33, 0
    %p149 = por %p147, %p148
    %s150 = ssub.s32 %s34, %s46
    %s151 = ssub.s32 %s35, %s42
    %s152 = sor.u32 %s150, %s151
    %p153 = scmp.eq.s32.totalorder %s152, 0
    %s155 = sadd.s32 %s154, 1
    %s156 = scalar_select %p153, %s154, %s155
    %p159 = pneg %p153
    %p160 = scmp.eq.s32.totalorder %s27, 3
    %p161 = por %p159, %p160
    %p162 = scmp.ne.s32.totalorder %s154, %s157
    %p163 = scmp.eq.s32.totalorder %s27, 0
    %p164 = por %p162, %p163
    %p165 = scmp.ne.s32.totalorder %s154, %s157
    %p166 = scmp.eq.s32.totalorder %s32, 3
    %p167 = por %p165, %p166
    %p168 = scmp.ne.s32.totalorder %s157, %s158
    %p169 = scmp.eq.s32.totalorder %s32, 0
    %p170 = por %p168, %p169
    %p171 = scmp.ne.s32.totalorder %s157, %s158
    %p172 = scmp.eq.s32.totalorder %s33, 3
    %p173 = por %p171, %p172
    %p175 = scmp.ne.s32.totalorder %s158, %s174
    %p176 = scmp.eq.s32.totalorder %s33, 0
    %p177 = por %p175, %p176
    %s178 = ssub.s32 %s34, %s46
    %s179 = ssub.s32 %s35, %s42
    %s180 = sor.u32 %s178, %s179
    %p181 = scmp.eq.s32.totalorder %s180, 0
    %s183 = sadd.s32 %s182, 1
    %s184 = scalar_select %p181, %s182, %s183
    %p187 = pneg %p181
    %p188 = scmp.eq.s32.totalorder %s27, 3
    %p189 = por %p187, %p188
    %p190 = scmp.ne.s32.totalorder %s182, %s185
    %p191 = scmp.eq.s32.totalorder %s27, 0
    %p192 = por %p190, %p191
    %p193 = scmp.ne.s32.totalorder %s182, %s185
    %p194 = scmp.eq.s32.totalorder %s32, 3
    %p195 = por %p193, %p194
    %p196 = scmp.ne.s32.totalorder %s185, %s186
    %p197 = scmp.eq.s32.totalorder %s32, 0
    %p198 = por %p196, %p197
    %p199 = scmp.ne.s32.totalorder %s185, %s186
    %p200 = scmp.eq.s32.totalorder %s33, 3
    %p201 = por %p199, %p200
    %p203 = scmp.ne.s32.totalorder %s186, %s202
    %p204 = scmp.eq.s32.totalorder %s33, 0
    %p205 = por %p203, %p204
    %s206 = ssub.s32 %s34, %s46
    %s207 = ssub.s32 %s35, %s42
    %s208 = sor.u32 %s206, %s207
    %p209 = scmp.eq.s32.totalorder %s208, 0
    %s211 = sadd.s32 %s210, 1
    %s212 = scalar_select %p209, %s210, %s211
    %p215 = pneg %p209
    %p216 = scmp.eq.s32.totalorder %s27, 3
    %p217 = por %p215, %p216
    %p218 = scmp.ne.s32.totalorder %s210, %s213
    %p219 = scmp.eq.s32.totalorder %s27, 0
    %p220 = por %p218, %p219
    %p221 = scmp.ne.s32.totalorder %s210, %s213
    %p222 = scmp.eq.s32.totalorder %s32, 3
    %p223 = por %p221, %p222
    %p224 = scmp.ne.s32.totalorder %s213, %s214
    %p225 = scmp.eq.s32.totalorder %s32, 0
    %p226 = por %p224, %p225
    %p227 = scmp.ne.s32.totalorder %s213, %s214
    %p228 = scmp.eq.s32.totalorder %s33, 3
    %p229 = por %p227, %p228
    %p231 = scmp.ne.s32.totalorder %s214, %s230
    %p232 = scmp.eq.s32.totalorder %s33, 0
    %p233 = por %p231, %p232
    %s234 = ssub.s32 %s34, %s46
    %s235 = ssub.s32 %s35, %s42
    %s236 = sor.u32 %s234, %s235
    %p237 = scmp.eq.s32.totalorder %s236, 0
    %s239 = sadd.s32 %s238, 1
    %s240 = scalar_select %p237, %s238, %s239
    %p243 = pneg %p237
    %p244 = scmp.eq.s32.totalorder %s27, 3
    %p245 = por %p243, %p244
    %p246 = scmp.ne.s32.totalorder %s238, %s241
    %p247 = scmp.eq.s32.totalorder %s27, 0
    %p248 = por %p246, %p247
    %p249 = scmp.ne.s32.totalorder %s238, %s241
    %p250 = scmp.eq.s32.totalorder %s32, 3
    %p251 = por %p249, %p250
    %p252 = scmp.ne.s32.totalorder %s241, %s242
    %p253 = scmp.eq.s32.totalorder %s32, 0
    %p254 = por %p252, %p253
    %p255 = scmp.ne.s32.totalorder %s241, %s242
    %p256 = scmp.eq.s32.totalorder %s33, 3
    %p257 = por %p255, %p256
    %p259 = scmp.ne.s32.totalorder %s242, %s258
    %p260 = scmp.eq.s32.totalorder %s33, 0
    %p261 = por %p259, %p260
    %s262 = ssub.s32 %s34, %s46
    %s263 = ssub.s32 %s35, %s42
    %s264 = sor.u32 %s262, %s263
    %p265 = scmp.eq.s32.totalorder %s264, 0
    %s267 = sadd.s32 %s266, 1
    %s268 = scalar_select %p265, %s266, %s267
    %p271 = pneg %p265
    %p272 = scmp.eq.s32.totalorder %s27, 3
    %p273 = por %p271, %p272
    %p274 = scmp.ne.s32.totalorder %s266, %s269
    %p275 = scmp.eq.s32.totalorder %s27, 0
    %p276 = por %p274, %p275
    %p277 = scmp.ne.s32.totalorder %s266, %s269
    %p278 = scmp.eq.s32.totalorder %s32, 3
    %p279 = por %p277, %p278
    %p280 = scmp.ne.s32.totalorder %s269, %s270
    %p281 = scmp.eq.s32.totalorder %s32, 0
    %p282 = por %p280, %p281
    %p283 = scmp.ne.s32.totalorder %s269, %s270
    %p284 = scmp.eq.s32.totalorder %s33, 3
    %p285 = por %p283, %p284
    %p287 = scmp.ne.s32.totalorder %s270, %s286
    %p288 = scmp.eq.s32.totalorder %s33, 0
    %p289 = por %p287, %p288
    %s290 = ssub.s32 %s34, %s46
    %s291 = ssub.s32 %s35, %s42
    %s292 = sor.u32 %s290, %s291
    %p293 = scmp.eq.s32.totalorder %s292, 0
    %s295 = sadd.s32 %s294, 1
    %s296 = scalar_select %p293, %s294, %s295
    %p299 = pneg %p293
    %p300 = scmp.eq.s32.totalorder %s27, 3
    %p301 = por %p299, %p300
    %p302 = scmp.ne.s32.totalorder %s294, %s297
    %p303 = scmp.eq.s32.totalorder %s27, 0
    %p304 = por %p302, %p303
    %p305 = scmp.ne.s32.totalorder %s294, %s297
    %p306 = scmp.eq.s32.totalorder %s32, 3
    %p307 = por %p305, %p306
    %p308 = scmp.ne.s32.totalorder %s297, %s298
    %p309 = scmp.eq.s32.totalorder %s32, 0
    %p310 = por %p308, %p309
    %p311 = scmp.ne.s32.totalorder %s297, %s298
    %p312 = scmp.eq.s32.totalorder %s33, 3
    %p313 = por %p311, %p312
    %p315 = scmp.ne.s32.totalorder %s298, %s314
    %p316 = scmp.eq.s32.totalorder %s33, 0
    %p317 = por %p315, %p316
    %s318 = ssub.s32 %s34, %s46
    %s319 = ssub.s32 %s35, %s42
    %s320 = sor.u32 %s318, %s319
    %p321 = scmp.eq.s32.totalorder %s320, 0
    %s323 = sadd.s32 %s322, 1
    %s324 = scalar_select %p321, %s322, %s323
    %p327 = pneg %p321
    %p328 = scmp.eq.s32.totalorder %s27, 3
    %p329 = por %p327, %p328
    %p330 = scmp.ne.s32.totalorder %s322, %s325
    %p331 = scmp.eq.s32.totalorder %s27, 0
    %p332 = por %p330, %p331
    %p333 = scmp.ne.s32.totalorder %s322, %s325
    %p334 = scmp.eq.s32.totalorder %s32, 3
    %p335 = por %p333, %p334
    %p336 = scmp.ne.s32.totalorder %s325, %s326
    %p337 = scmp.eq.s32.totalorder %s32, 0
    %p338 = por %p336, %p337
    %p339 = scmp.ne.s32.totalorder %s325, %s326
    %p340 = scmp.eq.s32.totalorder %s33, 3
    %p341 = por %p339, %p340
    %p343 = scmp.ne.s32.totalorder %s326, %s342
    %p344 = scmp.eq.s32.totalorder %s33, 0
    %p345 = por %p343, %p344
    %s346 = ssub.s32 %s34, %s46
    %s347 = ssub.s32 %s35, %s42
    %s348 = sor.u32 %s346, %s347
    %p349 = scmp.eq.s32.totalorder %s348, 0
    %s351 = sadd.s32 %s350, 1
    %s352 = scalar_select %p349, %s350, %s351
    %p355 = pneg %p349
    %p356 = scmp.eq.s32.totalorder %s27, 3
    %p357 = por %p355, %p356
    %p358 = scmp.ne.s32.totalorder %s350, %s353
    %p359 = scmp.eq.s32.totalorder %s27, 0
    %p360 = por %p358, %p359
    %p361 = scmp.ne.s32.totalorder %s350, %s353
    %p362 = scmp.eq.s32.totalorder %s32, 3
    %p363 = por %p361, %p362
    %p364 = scmp.ne.s32.totalorder %s353, %s354
    %p365 = scmp.eq.s32.totalorder %s32, 0
    %p366 = por %p364, %p365
    %p367 = scmp.ne.s32.totalorder %s353, %s354
    %p368 = scmp.eq.s32.totalorder %s33, 3
    %p369 = por %p367, %p368
    %p371 = scmp.ne.s32.totalorder %s354, %s370
    %p372 = scmp.eq.s32.totalorder %s33, 0
    %p373 = por %p371, %p372
    %s374 = ssub.s32 %s34, %s46
    %s375 = ssub.s32 %s35, %s42
    %s376 = sor.u32 %s374, %s375
    %p377 = scmp.eq.s32.totalorder %s376, 0
    %s379 = sadd.s32 %s378, 1
    %s380 = scalar_select %p377, %s378, %s379
    %p383 = pneg %p377
    %p384 = scmp.eq.s32.totalorder %s27, 3
    %p385 = por %p383, %p384
    %p386 = scmp.ne.s32.totalorder %s378, %s381
    %p387 = scmp.eq.s32.totalorder %s27, 0
    %p388 = por %p386, %p387
    %p389 = scmp.ne.s32.totalorder %s378, %s381
    %p390 = scmp.eq.s32.totalorder %s32, 3
    %p391 = por %p389, %p390
    %p392 = scmp.ne.s32.totalorder %s381, %s382
    %p393 = scmp.eq.s32.totalorder %s32, 0
    %p394 = por %p392, %p393
    %p395 = scmp.ne.s32.totalorder %s381, %s382
    %p396 = scmp.eq.s32.totalorder %s33, 3
    %p397 = por %p395, %p396
    %p399 = scmp.ne.s32.totalorder %s382, %s398
    %p400 = scmp.eq.s32.totalorder %s33, 0
    %p401 = por %p399, %p400
    %s402 = ssub.s32 %s34, %s46
    %s403 = ssub.s32 %s35, %s42
    %s404 = sor.u32 %s402, %s403
    %p405 = scmp.eq.s32.totalorder %s404, 0
    %s407 = sadd.s32 %s406, 1
    %s408 = scalar_select %p405, %s406, %s407
    %p411 = pneg %p405
    %p412 = scmp.eq.s32.totalorder %s27, 3
    %p413 = por %p411, %p412
    %p414 = scmp.ne.s32.totalorder %s406, %s409
    %p415 = scmp.eq.s32.totalorder %s27, 0
    %p416 = por %p414, %p415
    %p417 = scmp.ne.s32.totalorder %s406, %s409
    %p418 = scmp.eq.s32.totalorder %s32, 3
    %p419 = por %p417, %p418
    %p420 = scmp.ne.s32.totalorder %s409, %s410
    %p421 = scmp.eq.s32.totalorder %s32, 0
    %p422 = por %p420, %p421
    %p423 = scmp.ne.s32.totalorder %s409, %s410
    %p424 = scmp.eq.s32.totalorder %s33, 3
    %p425 = por %p423, %p424
    %p427 = scmp.ne.s32.totalorder %s410, %s426
    %p428 = scmp.eq.s32.totalorder %s33, 0
    %p429 = por %p427, %p428
    %s430 = ssub.s32 %s34, %s46
    %p431 = scmp.eq.s32.totalorder %s430, 0
    %s433 = sadd.s32 %s432, 1
    %s434 = scalar_select %p431, %s432, %s433
    %p437 = pneg %p431
    %p438 = scmp.eq.s32.totalorder %s27, 3
    %p439 = por %p437, %p438
    %p440 = scmp.ne.s32.totalorder %s432, %s435
    %p441 = scmp.eq.s32.totalorder %s27, 0
    %p442 = por %p440, %p441
    %p443 = scmp.ne.s32.totalorder %s432, %s435
    %p444 = scmp.eq.s32.totalorder %s32, 3
    %p445 = por %p443, %p444
    %p446 = scmp.ne.s32.totalorder %s435, %s436
    %p447 = scmp.eq.s32.totalorder %s32, 0
    %p448 = por %p446, %p447
    %p449 = scmp.ne.s32.totalorder %s435, %s436
    %p450 = scmp.eq.s32.totalorder %s33, 3
    %p451 = por %p449, %p450
    %p453 = scmp.ne.s32.totalorder %s436, %s452
    %p454 = scmp.eq.s32.totalorder %s33, 0
    %p455 = por %p453, %p454
    %p456 = scmp.le.s32.totalorder 1, %s27
    %p457 = scmp.lt.s32.totalorder %s27, 5
    %p458 = pnand %p456, %p457
    %p459 = pneg %p458
    // Predicated region
    $region9: #{fdsa_forward.2} parent=5 // pred_check
      _
    $region10: #{fdsa_forward.2} parent=5 // pred_check_branch
      %461 = sbr.rel (%p458) target = $region12
    $region11: #{fdsa_forward.2} parent=5 // pred_region
      %s462 = ssub.s32 %s27, 1
      // Predicated region
      $region13: #{fdsa_forward.2} parent=11 // pred_check
        %p463 = pneg %p86
      $region14: #{fdsa_forward.2} parent=11 // pred_check_branch
        %465 = sbr.rel (%p463) target = $region16
      $region15: #{fdsa_forward.2} parent=11 // pred_region
        _
      $region16: #{fdsa_forward.2} parent=11 // pred_fallthru
        _
    $region12: #{fdsa_forward.2} parent=5 // pred_fallthru
      _
    %p466 = scmp.lt.s32.totalorder %s27, 4
    // Predicated region
    $region17: #{fdsa_forward.2} parent=5 // pred_check
      %p467 = pneg %p466
    $region18: #{fdsa_forward.2} parent=5 // pred_check_branch
      %469 = sbr.rel (%p467) target = $region20
    $region19: #{fdsa_forward.2} parent=5 // pred_region
      // Predicated region
      $region21: #{fdsa_forward.2} parent=19 // pred_check
        %p470 = pneg %p59
      $region22: #{fdsa_forward.2} parent=19 // pred_check_branch
        %472 = sbr.rel (%p470) target = $region24
      $region23: #{fdsa_forward.2} parent=19 // pred_region
        %p473 = scmp.lt.s32.totalorder %s34, 1
        %s474 = scalar_select %p473, %s34, 1
        %s475 = smul.addr %s474, 2
        %s476 = smul.addr %s475, 8
        %s477 = scalar_lea.vmem %s1, %s476
      $region24: #{fdsa_forward.2} parent=19 // pred_fallthru
        _
      // Predicated region
      $region25: #{fdsa_forward.2} parent=19 // pred_check
        %p478 = pneg %p108
      $region26: #{fdsa_forward.2} parent=19 // pred_check_branch
        %480 = sbr.rel (%p478) target = $region28
      $region27: #{fdsa_forward.2} parent=19 // pred_region
        %p481 = scmp.lt.s32.totalorder %s34, 1
        %s482 = scalar_select %p481, %s34, 1
        %p483 = scmp.lt.s32.totalorder %s35, 1
        %s484 = scalar_select %p483, %s35, 1
        %s485 = smul.addr %s484, 4
        %s486 = smul.addr %s482, 8
        %s487 = sadd.s32 %s485, %s486
        %s488 = smul.addr %s487, 4
        %s489 = scalar_lea.vmem %s3, %s488
      $region28: #{fdsa_forward.2} parent=19 // pred_fallthru
        _
      // Predicated region
      $region29: #{fdsa_forward.2} parent=19 // pred_check
        %p490 = pneg %p136
      $region30: #{fdsa_forward.2} parent=19 // pred_check_branch
        %492 = sbr.rel (%p490) target = $region32
      $region31: #{fdsa_forward.2} parent=19 // pred_region
        %p493 = scmp.lt.s32.totalorder %s34, 1
        %s494 = scalar_select %p493, %s34, 1
        %p495 = scmp.lt.s32.totalorder %s35, 1
        %s496 = scalar_select %p495, %s35, 1
        %s497 = smul.addr %s494, 2
        %s498 = sadd.s32 %s496, %s497
        %s499 = scalar_lea.vmem %s4, %s498
      $region32: #{fdsa_forward.2} parent=19 // pred_fallthru
        _
      // Predicated region
      $region33: #{fdsa_forward.2} parent=19 // pred_check
        %p500 = pneg %p164
      $region34: #{fdsa_forward.2} parent=19 // pred_check_branch
        %502 = sbr.rel (%p500) target = $region36
      $region35: #{fdsa_forward.2} parent=19 // pred_region
        %p503 = scmp.lt.s32.totalorder %s34, 1
        %s504 = scalar_select %p503, %s34, 1
        %p505 = scmp.lt.s32.totalorder %s35, 1
        %s506 = scalar_select %p505, %s35, 1
        %s507 = smul.addr %s506, 4
        %s508 = smul.addr %s504, 8
        %s509 = sadd.s32 %s507, %s508
        %s510 = smul.addr %s509, 4
        %s511 = scalar_lea.vmem %s5, %s510
      $region36: #{fdsa_forward.2} parent=19 // pred_fallthru
        _
      // Predicated region
      $region37: #{fdsa_forward.2} parent=19 // pred_check
        %p512 = pneg %p192
      $region38: #{fdsa_forward.2} parent=19 // pred_check_branch
        %514 = sbr.rel (%p512) target = $region40
      $region39: #{fdsa_forward.2} parent=19 // pred_region
        %p515 = scmp.lt.s32.totalorder %s34, 1
        %s516 = scalar_select %p515, %s34, 1
        %p517 = scmp.lt.s32.totalorder %s35, 1
        %s518 = scalar_select %p517, %s35, 1
        %s519 = smul.addr %s516, 2
        %s520 = sadd.s32 %s518, %s519
        %s521 = scalar_lea.vmem %s6, %s520
      $region40: #{fdsa_forward.2} parent=19 // pred_fallthru
        _
      // Predicated region
      $region41: #{fdsa_forward.2} parent=19 // pred_check
        %p522 = pneg %p220
      $region42: #{fdsa_forward.2} parent=19 // pred_check_branch
        %524 = sbr.rel (%p522) target = $region44
      $region43: #{fdsa_forward.2} parent=19 // pred_region
        %p525 = scmp.lt.s32.totalorder %s34, 1
        %s526 = scalar_select %p525, %s34, 1
        %p527 = scmp.lt.s32.totalorder %s35, 1
        %s528 = scalar_select %p527, %s35, 1
        %s529 = smul.addr %s526, 2
        %s530 = sadd.s32 %s528, %s529
        %s531 = scalar_lea.vmem %s7, %s530
      $region44: #{fdsa_forward.2} parent=19 // pred_fallthru
        _
      // Predicated region
      $region45: #{fdsa_forward.2} parent=19 // pred_check
        %p532 = pneg %p248
      $region46: #{fdsa_forward.2} parent=19 // pred_check_branch
        %534 = sbr.rel (%p532) target = $region48
      $region47: #{fdsa_forward.2} parent=19 // pred_region
        %p535 = scmp.lt.s32.totalorder %s34, 1
        %s536 = scalar_select %p535, %s34, 1
        %p537 = scmp.lt.s32.totalorder %s35, 1
        %s538 = scalar_select %p537, %s35, 1
        %s539 = smul.addr %s536, 2
        %s540 = sadd.s32 %s538, %s539
        %s541 = scalar_lea.vmem %s8, %s540
      $region48: #{fdsa_forward.2} parent=19 // pred_fallthru
        _
      // Predicated region
      $region49: #{fdsa_forward.2} parent=19 // pred_check
        %p542 = pneg %p276
      $region50: #{fdsa_forward.2} parent=19 // pred_check_branch
        %544 = sbr.rel (%p542) target = $region52
      $region51: #{fdsa_forward.2} parent=19 // pred_region
        %p545 = scmp.lt.s32.totalorder %s34, 1
        %s546 = scalar_select %p545, %s34, 1
        %p547 = scmp.lt.s32.totalorder %s35, 1
        %s548 = scalar_select %p547, %s35, 1
        %s549 = smul.addr %s548, 4
        %s550 = smul.addr %s546, 8
        %s551 = sadd.s32 %s549, %s550
        %s552 = smul.addr %s551, 4
        %s553 = scalar_lea.vmem %s9, %s552
      $region52: #{fdsa_forward.2} parent=19 // pred_fallthru
        _
      // Predicated region
      $region53: #{fdsa_forward.2} parent=19 // pred_check
        %p554 = pneg %p304
      $region54: #{fdsa_forward.2} parent=19 // pred_check_branch
        %556 = sbr.rel (%p554) target = $region56
      $region55: #{fdsa_forward.2} parent=19 // pred_region
        %p557 = scmp.lt.s32.totalorder %s34, 1
        %s558 = scalar_select %p557, %s34, 1
        %p559 = scmp.lt.s32.totalorder %s35, 1
        %s560 = scalar_select %p559, %s35, 1
        %s561 = smul.addr %s558, 2
        %s562 = sadd.s32 %s560, %s561
        %s563 = scalar_lea.vmem %s10, %s562
      $region56: #{fdsa_forward.2} parent=19 // pred_fallthru
        _
      // Predicated region
      $region57: #{fdsa_forward.2} parent=19 // pred_check
        %p564 = pneg %p332
      $region58: #{fdsa_forward.2} parent=19 // pred_check_branch
        %566 = sbr.rel (%p564) target = $region60
      $region59: #{fdsa_forward.2} parent=19 // pred_region
        %p567 = scmp.lt.s32.totalorder %s34, 1
        %s568 = scalar_select %p567, %s34, 1
        %p569 = scmp.lt.s32.totalorder %s35, 1
        %s570 = scalar_select %p569, %s35, 1
        %s571 = smul.addr %s570, 8
        %s572 = smul.addr %s568, 16
        %s573 = sadd.s32 %s571, %s572
        %s574 = smul.addr %s573, 4
        %s575 = scalar_lea.vmem %s11, %s574
      $region60: #{fdsa_forward.2} parent=19 // pred_fallthru
        _
      // Predicated region
      $region61: #{fdsa_forward.2} parent=19 // pred_check
        %p576 = pneg %p360
      $region62: #{fdsa_forward.2} parent=19 // pred_check_branch
        %578 = sbr.rel (%p576) target = $region64
      $region63: #{fdsa_forward.2} parent=19 // pred_region
        %p579 = scmp.lt.s32.totalorder %s34, 1
        %s580 = scalar_select %p579, %s34, 1
        %p581 = scmp.lt.s32.totalorder %s35, 1
        %s582 = scalar_select %p581, %s35, 1
        %s583 = smul.addr %s580, 2
        %s584 = sadd.s32 %s582, %s583
        %s585 = scalar_lea.vmem %s12, %s584
      $region64: #{fdsa_forward.2} parent=19 // pred_fallthru
        _
      // Predicated region
      $region65: #{fdsa_forward.2} parent=19 // pred_check
        %p586 = pneg %p388
      $region66: #{fdsa_forward.2} parent=19 // pred_check_branch
        %588 = sbr.rel (%p586) target = $region68
      $region67: #{fdsa_forward.2} parent=19 // pred_region
        %p589 = scmp.lt.s32.totalorder %s34, 1
        %s590 = scalar_select %p589, %s34, 1
        %p591 = scmp.lt.s32.totalorder %s35, 1
        %s592 = scalar_select %p591, %s35, 1
        %s593 = smul.addr %s590, 2
        %s594 = sadd.s32 %s592, %s593
        %s595 = scalar_lea.vmem %s13, %s594
      $region68: #{fdsa_forward.2} parent=19 // pred_fallthru
        _
      // Predicated region
      $region69: #{fdsa_forward.2} parent=19 // pred_check
        %p596 = pneg %p416
      $region70: #{fdsa_forward.2} parent=19 // pred_check_branch
        %598 = sbr.rel (%p596) target = $region72
      $region71: #{fdsa_forward.2} parent=19 // pred_region
        %p599 = scmp.lt.s32.totalorder %s34, 1
        %s600 = scalar_select %p599, %s34, 1
        %p601 = scmp.lt.s32.totalorder %s35, 1
        %s602 = scalar_select %p601, %s35, 1
        %s603 = smul.addr %s600, 2
        %s604 = sadd.s32 %s602, %s603
        %s605 = scalar_lea.vmem %s14, %s604
      $region72: #{fdsa_forward.2} parent=19 // pred_fallthru
        _
    $region20: #{fdsa_forward.2} parent=5 // pred_fallthru
      _
    %p606 = scmp.le.s32.totalorder 1, %s27
    %p607 = scmp.lt.s32.totalorder %s27, 5
    %p608 = pnand %p606, %p607
    %p609 = pneg %p608
    // Predicated region
    $region73: #{fdsa_forward.2} parent=5 // pred_check
      _
    $region74: #{fdsa_forward.2} parent=5 // pred_check_branch
      %611 = sbr.rel (%p608) target = $region76
    $region75: #{fdsa_forward.2} parent=5 // pred_region
      %s612 = ssub.s32 %s27, 1
      %p613 = scmp.lt.s32.totalorder %s36, 1
      %s614 = scalar_select %p613, %s36, 1
      %s615 = smul.addr %s614, 2
      %s616 = smul.addr %s615, 8
      %s617 = scalar_lea.vmem %s1, %s616
      %p618 = pneg %p65
      %p619 = pneg %p62
      %p620 = pneg %p86
      %p621 = pneg %p83
      %p622 = scmp.lt.s32.totalorder %s36, 1
      %s623 = scalar_select %p622, %s36, 1
      %p624 = scmp.lt.s32.totalorder %s37, 1
      %s625 = scalar_select %p624, %s37, 1
      %s626 = smul.addr %s625, 4
      %s627 = smul.addr %s623, 8
      %s628 = sadd.s32 %s626, %s627
      %s629 = smul.addr %s628, 4
      %s630 = scalar_lea.vmem %s3, %s629
      %p631 = pneg %p114
      %p632 = pneg %p111
      %p633 = scmp.lt.s32.totalorder %s36, 1
      %s634 = scalar_select %p633, %s36, 1
      %p635 = scmp.lt.s32.totalorder %s37, 1
      %s636 = scalar_select %p635, %s37, 1
      %s637 = smul.addr %s634, 2
      %s638 = sadd.s32 %s636, %s637
      %s639 = scalar_lea.vmem %s4, %s638
      %p640 = pneg %p142
      %p641 = pneg %p139
      %p642 = scmp.lt.s32.totalorder %s36, 1
      %s643 = scalar_select %p642, %s36, 1
      %p644 = scmp.lt.s32.totalorder %s37, 1
      %s645 = scalar_select %p644, %s37, 1
      %s646 = smul.addr %s645, 4
      %s647 = smul.addr %s643, 8
      %s648 = sadd.s32 %s646, %s647
      %s649 = smul.addr %s648, 4
      %s650 = scalar_lea.vmem %s5, %s649
      %p651 = pneg %p170
      %p652 = pneg %p167
      %p653 = scmp.lt.s32.totalorder %s36, 1
      %s654 = scalar_select %p653, %s36, 1
      %p655 = scmp.lt.s32.totalorder %s37, 1
      %s656 = scalar_select %p655, %s37, 1
      %s657 = smul.addr %s654, 2
      %s658 = sadd.s32 %s656, %s657
      %s659 = scalar_lea.vmem %s6, %s658
      %p660 = pneg %p198
      %p661 = pneg %p195
      %p662 = scmp.lt.s32.totalorder %s36, 1
      %s663 = scalar_select %p662, %s36, 1
      %p664 = scmp.lt.s32.totalorder %s37, 1
      %s665 = scalar_select %p664, %s37, 1
      %s666 = smul.addr %s663, 2
      %s667 = sadd.s32 %s665, %s666
      %s668 = scalar_lea.vmem %s7, %s667
      %p669 = pneg %p226
      %p670 = pneg %p223
      %p671 = scmp.lt.s32.totalorder %s36, 1
      %s672 = scalar_select %p671, %s36, 1
      %p673 = scmp.lt.s32.totalorder %s37, 1
      %s674 = scalar_select %p673, %s37, 1
      %s675 = smul.addr %s672, 2
      %s676 = sadd.s32 %s674, %s675
      %s677 = scalar_lea.vmem %s8, %s676
      %p678 = pneg %p254
      %p679 = pneg %p251
      %p680 = scmp.lt.s32.totalorder %s36, 1
      %s681 = scalar_select %p680, %s36, 1
      %p682 = scmp.lt.s32.totalorder %s37, 1
      %s683 = scalar_select %p682, %s37, 1
      %s684 = smul.addr %s683, 4
      %s685 = smul.addr %s681, 8
      %s686 = sadd.s32 %s684, %s685
      %s687 = smul.addr %s686, 4
      %s688 = scalar_lea.vmem %s9, %s687
      %p689 = pneg %p282
      %p690 = pneg %p279
      %p691 = scmp.lt.s32.totalorder %s36, 1
      %s692 = scalar_select %p691, %s36, 1
      %p693 = scmp.lt.s32.totalorder %s37, 1
      %s694 = scalar_select %p693, %s37, 1
      %s695 = smul.addr %s692, 2
      %s696 = sadd.s32 %s694, %s695
      %s697 = scalar_lea.vmem %s10, %s696
      %p698 = pneg %p310
      %p699 = pneg %p307
      %p700 = scmp.lt.s32.totalorder %s36, 1
      %s701 = scalar_select %p700, %s36, 1
      %p702 = scmp.lt.s32.totalorder %s37, 1
      %s703 = scalar_select %p702, %s37, 1
      %s704 = smul.addr %s703, 8
      %s705 = smul.addr %s701, 16
      %s706 = sadd.s32 %s704, %s705
      %s707 = smul.addr %s706, 4
      %s708 = scalar_lea.vmem %s11, %s707
      %p709 = pneg %p338
      %p710 = pneg %p335
      %p711 = scmp.lt.s32.totalorder %s36, 1
      %s712 = scalar_select %p711, %s36, 1
      %p713 = scmp.lt.s32.totalorder %s37, 1
      %s714 = scalar_select %p713, %s37, 1
      %s715 = smul.addr %s712, 2
      %s716 = sadd.s32 %s714, %s715
      %s717 = scalar_lea.vmem %s12, %s716
      %p718 = pneg %p366
      %p719 = pneg %p363
      %p720 = scmp.lt.s32.totalorder %s36, 1
      %s721 = scalar_select %p720, %s36, 1
      %p722 = scmp.lt.s32.totalorder %s37, 1
      %s723 = scalar_select %p722, %s37, 1
      %s724 = smul.addr %s721, 2
      %s725 = sadd.s32 %s723, %s724
      %s726 = scalar_lea.vmem %s13, %s725
      %p727 = pneg %p394
      %p728 = pneg %p391
      %p729 = scmp.lt.s32.totalorder %s36, 1
      %s730 = scalar_select %p729, %s36, 1
      %p731 = scmp.lt.s32.totalorder %s37, 1
      %s732 = scalar_select %p731, %s37, 1
      %s733 = smul.addr %s730, 2
      %s734 = sadd.s32 %s732, %s733
      %s735 = scalar_lea.vmem %s14, %s734
      %p736 = pneg %p422
      %p737 = pneg %p419
      %p738 = pneg %p448
      %p739 = pneg %p445
      %p740 = scmp.lt.s32.totalorder %s36, 1
      %s741 = scalar_select %p740, %s36, 1
      %s742 = smul.addr %s741, 2
      %s743 = scalar_lea.vmem %s15, %s742
      %p744 = scmp.lt.s32.totalorder %s36, 1
      %s745 = scalar_select %p744, %s36, 1
      %s746 = smul.addr %s745, 2
      %s747 = smul.addr %s746, 8
      %s748 = scalar_lea.vmem %s1, %s747
      %p749 = scmp.lt.s32.totalorder %s36, 1
      %s750 = scalar_select %p749, %s36, 1
      %p751 = scmp.lt.s32.totalorder %s37, 1
      %s752 = scalar_select %p751, %s37, 1
      %s753 = smul.addr %s752, 4
      %s754 = smul.addr %s750, 8
      %s755 = sadd.s32 %s753, %s754
      %s756 = smul.addr %s755, 4
      %s757 = scalar_lea.vmem %s3, %s756
      %p758 = scmp.lt.s32.totalorder %s36, 1
      %s759 = scalar_select %p758, %s36, 1
      %p760 = scmp.lt.s32.totalorder %s37, 1
      %s761 = scalar_select %p760, %s37, 1
      %s762 = smul.addr %s759, 2
      %s763 = sadd.s32 %s761, %s762
      %s764 = scalar_lea.vmem %s4, %s763
      %p765 = scmp.lt.s32.totalorder %s36, 1
      %s766 = scalar_select %p765, %s36, 1
      %p767 = scmp.lt.s32.totalorder %s37, 1
      %s768 = scalar_select %p767, %s37, 1
      %s769 = smul.addr %s768, 4
      %s770 = smul.addr %s766, 8
      %s771 = sadd.s32 %s769, %s770
      %s772 = smul.addr %s771, 4
      %s773 = scalar_lea.vmem %s5, %s772
      %p774 = scmp.lt.s32.totalorder %s36, 1
      %s775 = scalar_select %p774, %s36, 1
      %p776 = scmp.lt.s32.totalorder %s37, 1
      %s777 = scalar_select %p776, %s37, 1
      %s778 = smul.addr %s775, 2
      %s779 = sadd.s32 %s777, %s778
      %s780 = scalar_lea.vmem %s6, %s779
      %p781 = scmp.lt.s32.totalorder %s36, 1
      %s782 = scalar_select %p781, %s36, 1
      %p783 = scmp.lt.s32.totalorder %s37, 1
      %s784 = scalar_select %p783, %s37, 1
      %s785 = smul.addr %s782, 2
      %s786 = sadd.s32 %s784, %s785
      %s787 = scalar_lea.vmem %s7, %s786
      %p788 = scmp.lt.s32.totalorder %s36, 1
      %s789 = scalar_select %p788, %s36, 1
      %p790 = scmp.lt.s32.totalorder %s37, 1
      %s791 = scalar_select %p790, %s37, 1
      %s792 = smul.addr %s789, 2
      %s793 = sadd.s32 %s791, %s792
      %s794 = scalar_lea.vmem %s8, %s793
      %p795 = scmp.lt.s32.totalorder %s36, 1
      %s796 = scalar_select %p795, %s36, 1
      %p797 = scmp.lt.s32.totalorder %s37, 1
      %s798 = scalar_select %p797, %s37, 1
      %s799 = smul.addr %s798, 4
      %s800 = smul.addr %s796, 8
      %s801 = sadd.s32 %s799, %s800
      %s802 = smul.addr %s801, 4
      %s803 = scalar_lea.vmem %s9, %s802
      %p804 = scmp.lt.s32.totalorder %s36, 1
      %s805 = scalar_select %p804, %s36, 1
      %p806 = scmp.lt.s32.totalorder %s37, 1
      %s807 = scalar_select %p806, %s37, 1
      %s808 = smul.addr %s805, 2
      %s809 = sadd.s32 %s807, %s808
      %s810 = scalar_lea.vmem %s10, %s809
      %p811 = scmp.lt.s32.totalorder %s36, 1
      %s812 = scalar_select %p811, %s36, 1
      %p813 = scmp.lt.s32.totalorder %s37, 1
      %s814 = scalar_select %p813, %s37, 1
      %s815 = smul.addr %s814, 8
      %s816 = smul.addr %s812, 16
      %s817 = sadd.s32 %s815, %s816
      %s818 = smul.addr %s817, 4
      %s819 = scalar_lea.vmem %s11, %s818
      %p820 = scmp.lt.s32.totalorder %s36, 1
      %s821 = scalar_select %p820, %s36, 1
      %p822 = scmp.lt.s32.totalorder %s37, 1
      %s823 = scalar_select %p822, %s37, 1
      %s824 = smul.addr %s821, 2
      %s825 = sadd.s32 %s823, %s824
      %s826 = scalar_lea.vmem %s12, %s825
      %p827 = scmp.lt.s32.totalorder %s36, 1
      %s828 = scalar_select %p827, %s36, 1
      %p829 = scmp.lt.s32.totalorder %s37, 1
      %s830 = scalar_select %p829, %s37, 1
      %s831 = smul.addr %s828, 2
      %s832 = sadd.s32 %s830, %s831
      %s833 = scalar_lea.vmem %s13, %s832
      %p834 = scmp.lt.s32.totalorder %s36, 1
      %s835 = scalar_select %p834, %s36, 1
      %p836 = scmp.lt.s32.totalorder %s37, 1
      %s837 = scalar_select %p836, %s37, 1
      %s838 = smul.addr %s835, 2
      %s839 = sadd.s32 %s837, %s838
      %s840 = scalar_lea.vmem %s14, %s839
      %p841 = scmp.lt.s32.totalorder %s36, 1
      %s842 = scalar_select %p841, %s36, 1
      %s843 = smul.addr %s842, 2
      %s844 = scalar_lea.vmem %s15, %s843
      %p846 = scmp.eq.s32.totalorder %s37, 0
      // Predicated region
      $region77: #{fdsa_forward.2} parent=75 // pred_check
        %p847 = pneg %p846
      $region78: #{fdsa_forward.2} parent=75 // pred_check_branch
        %849 = sbr.rel (%p847) target = $region80
      $region79: #{fdsa_forward.2} parent=75 // pred_region
        %v850 = vld [vmem:[%s748] sm:$0xff]
        %v851 = vld [vmem:[%s748 + $0x8] sm:$0xff]
        %vm852 = vcmask 261120
        %853 = vst.msk [vmem:[#allocation2] sm:$0xff] %vm852, %v850
        %854 = vst.msk [vmem:[#allocation2 + $0x8] sm:$0xff] %vm852, %v851
      $region80: #{fdsa_forward.2} parent=75 // pred_fallthru
        _
      %v855 = vld [vmem:[#allocation2] sm:$0xff]
      %v856 = vld [vmem:[#allocation2 + $0x8] sm:$0xff]
      %v857 = vld [vmem:[%s2] sm:$0x1]
      %v858 = vld [vmem:[%s2 + $0x1] sm:$0x1]
      %v859 = vpack.c.bf16 %v856, %v855
      %v860 = vld [vmem:[%s757] sm:$0xf]
      %v861 = vld [vmem:[%s757 + $0x4] sm:$0xf]
      %v862 = vld [vmem:[%s757 + $0x8] sm:$0xf]
      %v863 = vld [vmem:[%s757 + $0xc] sm:$0xf]
      %v864 = vld [vmem:[%s764] sm:$0x1]
      %v866 = vlaneseq
      %v867 = vshrl.u32 %v866, 7
      %v868 = vsub.s32 0, %v867
      %v869 = vrot.slane %v864, %v868
      %v875 = vunpack.c.l.b16 %v860
      %v876 = vunpack.c.l.b16 %v861
      %v877 = vunpack.c.l.b16 %v862
      %v878 = vunpack.c.l.b16 %v863
      %v879 = vpack.c.b16 %v876, %v875
      %v880 = vpack.c.b16 %v878, %v877
      %vm883 = vcmask 261120
      %v885 = vsel %vm883, %v859, 0
      %887 = vmatprep.subr.bf16.mxu0 0
      %888 = vmatpush1.bf16.msra.mxu0 %v879
      %889 = vmatprep.subr.bf16.mxu0 0
      %890 = vmatpush1.bf16.msra.mxu0 %v880
      %891 = vmatprep.subr.bf16.mxu0 0
      %892 = vmatpush1.bf16.msra.mxu0 0
      %893 = vmatprep.subr.bf16.mxu0 0
      %894 = vmatpush1.bf16.msra.mxu0 0
      %895 = vmatprep.subr.bf16.mxu0 0
      %896 = vmatpush1.bf16.msra.mxu0 0
      %897 = vmatprep.subr.bf16.mxu0 0
      %898 = vmatpush1.bf16.msra.mxu0 0
      %899 = vmatprep.subr.bf16.mxu0 0
      %900 = vmatpush1.bf16.msra.mxu0 0
      %901 = vmatprep.subr.bf16.mxu0 0
      %902 = vmatpush1.bf16.msra.mxu0 0
      %903 = vmatprep.subr.bf16.mxu0 0
      %904 = vmatpush1.bf16.msra.mxu0 0
      %905 = vmatprep.subr.bf16.mxu0 0
      %906 = vmatpush1.bf16.msra.mxu0 0
      %907 = vmatprep.subr.bf16.mxu0 0
      %908 = vmatpush1.bf16.msra.mxu0 0
      %909 = vmatprep.subr.bf16.mxu0 0
      %910 = vmatpush1.bf16.msra.mxu0 0
      %911 = vmatprep.subr.bf16.mxu0 0
      %912 = vmatpush1.bf16.msra.mxu0 0
      %913 = vmatprep.subr.bf16.mxu0 0
      %914 = vmatpush1.bf16.msra.mxu0 0
      %915 = vmatprep.subr.bf16.mxu0 0
      %916 = vmatpush1.bf16.msra.mxu0 0
      %917 = vmatprep.subr.bf16.mxu0 0
      %918 = vmatpush1.bf16.msra.mxu0 0
      %919 = vmatprep.mubr.bf16.mxu0 0
      %920 = vmatmul.mubr.bf16.gmra.mrb[0].mxu0 %v885
      %v921 = vpop.f32.mrb[0].mxu0
      %v922 = vadd.f32 %v869, %v921
      %v923 = vpop.f32.mrb[0].mxu0
      %v924 = vpop.f32.mrb[0].mxu0
      %v925 = vadd.f32 %v869, %v924
      %v926 = vpop.f32.mrb[0].mxu0
      %927 = vdwg.mxu0
      %v928 = vmul.f32 %v922, 0.25
      %v929 = vmul.f32 %v925, 0.25
      %v930 = vpack.c.bf16 %v928, %v928
      %v931 = vpack.c.bf16 %v929, %v929
      %v932 = vpack.c.bf16 %v922, %v922
      %v933 = vpack.c.bf16 %v925, %v925
      %v936 = vlaneseq
      %v937 = vshrl.u32 %v936, 7
      %v938 = vsub.s32 0, %v937
      %v939 = vrot.slane %v857, %v938
      %v940 = vlaneseq
      %v941 = vshrl.u32 %v940, 7
      %v942 = vsub.s32 0, %v941
      %v943 = vrot.slane %v858, %v942
      %947 = vrot.lane.b32.xlu0 %v932, 96
      %v948 = vpop.permute.xlu0 %947
      %vm949 = vcmask 130048
      %v951 = vsel %vm949, %v930, 0
      %v954 = vsel %vm949, %v948, 0
      %956 = vmatprep.subr.bf16.mxu0 0
      %957 = vmatpush1.bf16.xpose.msra.mxu0 %v954
      %958 = vmatprep.subr.bf16.mxu0 0
      %959 = vmatpush1.bf16.xpose.msra.mxu0 0
      %960 = vmatprep.subr.bf16.mxu0 0
      %961 = vmatpush1.bf16.xpose.msra.mxu0 0
      %962 = vmatprep.subr.bf16.mxu0 0
      %963 = vmatpush1.bf16.xpose.msra.mxu0 0
      %964 = vmatprep.subr.bf16.mxu0 0
      %965 = vmatpush1.bf16.xpose.msra.mxu0 0
      %966 = vmatprep.subr.bf16.mxu0 0
      %967 = vmatpush1.bf16.xpose.msra.mxu0 0
      %968 = vmatprep.subr.bf16.mxu0 0
      %969 = vmatpush1.bf16.xpose.msra.mxu0 0
      %970 = vmatprep.subr.bf16.mxu0 0
      %971 = vmatpush1.bf16.xpose.msra.mxu0 0
      %972 = vmatprep.subr.bf16.mxu0 0
      %973 = vmatpush1.bf16.xpose.msra.mxu0 0
      %974 = vmatprep.subr.bf16.mxu0 0
      %975 = vmatpush1.bf16.xpose.msra.mxu0 0
      %976 = vmatprep.subr.bf16.mxu0 0
      %977 = vmatpush1.bf16.xpose.msra.mxu0 0
      %978 = vmatprep.subr.bf16.mxu0 0
      %979 = vmatpush1.bf16.xpose.msra.mxu0 0
      %980 = vmatprep.subr.bf16.mxu0 0
      %981 = vmatpush1.bf16.xpose.msra.mxu0 0
      %982 = vmatprep.subr.bf16.mxu0 0
      %983 = vmatpush1.bf16.xpose.msra.mxu0 0
      %984 = vmatprep.subr.bf16.mxu0 0
      %985 = vmatpush1.bf16.xpose.msra.mxu0 0
      %986 = vmatprep.subr.bf16.mxu0 0
      %987 = vmatpush1.bf16.xpose.msra.mxu0 0
      %988 = vmatprep.mubr.bf16.mxu0 0
      %989 = vmatmul.mubr.bf16.gmra.mrb[0].mxu0 %v951
      %v990 = vpop.f32.mrb[0].mxu0
      %v991 = vadd.f32 %v939, %v990
      %v992 = vpop.f32.mrb[0].mxu0
      %v993 = vpop.f32.mrb[0].mxu0
      %v994 = vpop.f32.mrb[0].mxu0
      %995 = vdwg.mxu0
      %997 = vrot.lane.b32.xlu0 %v933, 96
      %v998 = vpop.permute.xlu0 %997
      %v1000 = vsel %vm949, %v931, 0
      %v1003 = vsel %vm949, %v998, 0
      %1005 = vmatprep.subr.bf16.mxu0 0
      %1006 = vmatpush1.bf16.xpose.msra.mxu0 %v1003
      %1007 = vmatprep.subr.bf16.mxu0 0
      %1008 = vmatpush1.bf16.xpose.msra.mxu0 0
      %1009 = vmatprep.subr.bf16.mxu0 0
      %1010 = vmatpush1.bf16.xpose.msra.mxu0 0
      %1011 = vmatprep.subr.bf16.mxu0 0
      %1012 = vmatpush1.bf16.xpose.msra.mxu0 0
      %1013 = vmatprep.subr.bf16.mxu0 0
      %1014 = vmatpush1.bf16.xpose.msra.mxu0 0
      %1015 = vmatprep.subr.bf16.mxu0 0
      %1016 = vmatpush1.bf16.xpose.msra.mxu0 0
      %1017 = vmatprep.subr.bf16.mxu0 0
      %1018 = vmatpush1.bf16.xpose.msra.mxu0 0
      %1019 = vmatprep.subr.bf16.mxu0 0
      %1020 = vmatpush1.bf16.xpose.msra.mxu0 0
      %1021 = vmatprep.subr.bf16.mxu0 0
      %1022 = vmatpush1.bf16.xpose.msra.mxu0 0
      %1023 = vmatprep.subr.bf16.mxu0 0
      %1024 = vmatpush1.bf16.xpose.msra.mxu0 0
      %1025 = vmatprep.subr.bf16.mxu0 0
      %1026 = vmatpush1.bf16.xpose.msra.mxu0 0
      %1027 = vmatprep.subr.bf16.mxu0 0
      %1028 = vmatpush1.bf16.xpose.msra.mxu0 0
      %1029 = vmatprep.subr.bf16.mxu0 0
      %1030 = vmatpush1.bf16.xpose.msra.mxu0 0
      %1031 = vmatprep.subr.bf16.mxu0 0
      %1032 = vmatpush1.bf16.xpose.msra.mxu0 0
      %1033 = vmatprep.subr.bf16.mxu0 0
      %1034 = vmatpush1.bf16.xpose.msra.mxu0 0
      %1035 = vmatprep.subr.bf16.mxu0 0
      %1036 = vmatpush1.bf16.xpose.msra.mxu0 0
      %1037 = vmatprep.mubr.bf16.mxu0 0
      %1038 = vmatmul.mubr.bf16.gmra.mrb[0].mxu0 %v1000
      %v1039 = vpop.f32.mrb[0].mxu0
      %v1040 = vadd.f32 %v943, %v1039
      %v1041 = vpop.f32.mrb[0].mxu0
      %v1042 = vpop.f32.mrb[0].mxu0
      %v1043 = vpop.f32.mrb[0].mxu0
      %1044 = vdwg.mxu0
      %vm1045 = vcmask 64512
      %v1046 = vsel %vm1045, %v991, -inf
      %1047 = vmax.xlane.f32.xlu0 %v1046
      %v1048 = vpop.xlane.xlu0 %1047
      %v1049 = vsel %vm1045, %v1040, -inf
      %1050 = vmax.xlane.f32.xlu0 %v1049
      %v1051 = vpop.xlane.xlu0 %1050
      %v1052 = vsub.f32 %v991, %v1048
      %v1053 = vsub.f32 %v1040, %v1051
      %v1054 = vmul.f32 %v1052, 1.442695
      %v1055 = vpow.pop %v1054
      %v1056 = vmul.f32 %v1053, 1.442695
      %v1057 = vpow.pop %v1056
      %v1058 = vsel %vm1045, %v1055, 0.0
      %1059 = vadd.xlane.f32.xlu0 %v1058
      %v1060 = vpop.xlane.xlu0 %1059
      %v1061 = vsel %vm1045, %v1057, 0.0
      %1062 = vadd.xlane.f32.xlu0 %v1061
      %v1063 = vpop.xlane.xlu0 %1062
      %v1064 = vrcp.pop %v1060
      %v1065 = vrcp.pop %v1063
      %v1066 = vmul.f32 %v1055, %v1064
      %v1067 = vmul.f32 %v1057, %v1065
      %v1068 = vpack.c.bf16 %v1066, %v1066
      %v1069 = vpack.c.bf16 %v1067, %v1067
      %1070 = vrot.lane.b32.xlu0 %v932, 64
      %v1071 = vpop.permute.xlu0 %1070
      %v1073 = vsel %vm1045, %v1068, 0
      %vm1075 = vcmask 1043456
      %v1077 = vsel %vm1075, %v1071, 0
      %1079 = vmatprep.subr.bf16.mxu0 0
      %1080 = vmatpush1.bf16.msra.mxu0 %v1077
      %1081 = vmatprep.subr.bf16.mxu0 0
      %1082 = vmatpush1.bf16.msra.mxu0 0
      %1083 = vmatprep.subr.bf16.mxu0 0
      %1084 = vmatpush1.bf16.msra.mxu0 0
      %1085 = vmatprep.subr.bf16.mxu0 0
      %1086 = vmatpush1.bf16.msra.mxu0 0
      %1087 = vmatprep.subr.bf16.mxu0 0
      %1088 = vmatpush1.bf16.msra.mxu0 0
      %1089 = vmatprep.subr.bf16.mxu0 0
      %1090 = vmatpush1.bf16.msra.mxu0 0
      %1091 = vmatprep.subr.bf16.mxu0 0
      %1092 = vmatpush1.bf16.msra.mxu0 0
      %1093 = vmatprep.subr.bf16.mxu0 0
      %1094 = vmatpush1.bf16.msra.mxu0 0
      %1095 = vmatprep.subr.bf16.mxu0 0
      %1096 = vmatpush1.bf16.msra.mxu0 0
      %1097 = vmatprep.subr.bf16.mxu0 0
      %1098 = vmatpush1.bf16.msra.mxu0 0
      %1099 = vmatprep.subr.bf16.mxu0 0
      %1100 = vmatpush1.bf16.msra.mxu0 0
      %1101 = vmatprep.subr.bf16.mxu0 0
      %1102 = vmatpush1.bf16.msra.mxu0 0
      %1103 = vmatprep.subr.bf16.mxu0 0
      %1104 = vmatpush1.bf16.msra.mxu0 0
      %1105 = vmatprep.subr.bf16.mxu0 0
      %1106 = vmatpush1.bf16.msra.mxu0 0
      %1107 = vmatprep.subr.bf16.mxu0 0
      %1108 = vmatpush1.bf16.msra.mxu0 0
      %1109 = vmatprep.subr.bf16.mxu0 0
      %1110 = vmatpush1.bf16.msra.mxu0 0
      %1111 = vmatprep.mubr.bf16.mxu0 0
      %1112 = vmatmul.mubr.bf16.gmra.mrb[0].mxu0 %v1073
      %v1113 = vpop.f32.mrb[0].mxu0
      %v1114 = vadd.f32 0.0, %v1113
      %v1115 = vpop.f32.mrb[0].mxu0
      %v1116 = vpop.f32.mrb[0].mxu0
      %v1117 = vpop.f32.mrb[0].mxu0
      %1118 = vdwg.mxu0
      %1119 = vrot.lane.b32.xlu0 %v933, 64
      %v1120 = vpop.permute.xlu0 %1119
      %v1122 = vsel %vm1045, %v1069, 0
      %v1125 = vsel %vm1075, %v1120, 0
      %1127 = vmatprep.subr.bf16.mxu0 0
      %1128 = vmatpush1.bf16.msra.mxu0 %v1125
      %1129 = vmatprep.subr.bf16.mxu0 0
      %1130 = vmatpush1.bf16.msra.mxu0 0
      %1131 = vmatprep.subr.bf16.mxu0 0
      %1132 = vmatpush1.bf16.msra.mxu0 0
      %1133 = vmatprep.subr.bf16.mxu0 0
      %1134 = vmatpush1.bf16.msra.mxu0 0
      %1135 = vmatprep.subr.bf16.mxu0 0
      %1136 = vmatpush1.bf16.msra.mxu0 0
      %1137 = vmatprep.subr.bf16.mxu0 0
      %1138 = vmatpush1.bf16.msra.mxu0 0
      %1139 = vmatprep.subr.bf16.mxu0 0
      %1140 = vmatpush1.bf16.msra.mxu0 0
      %1141 = vmatprep.subr.bf16.mxu0 0
      %1142 = vmatpush1.bf16.msra.mxu0 0
      %1143 = vmatprep.subr.bf16.mxu0 0
      %1144 = vmatpush1.bf16.msra.mxu0 0
      %1145 = vmatprep.subr.bf16.mxu0 0
      %1146 = vmatpush1.bf16.msra.mxu0 0
      %1147 = vmatprep.subr.bf16.mxu0 0
      %1148 = vmatpush1.bf16.msra.mxu0 0
      %1149 = vmatprep.subr.bf16.mxu0 0
      %1150 = vmatpush1.bf16.msra.mxu0 0
      %1151 = vmatprep.subr.bf16.mxu0 0
      %1152 = vmatpush1.bf16.msra.mxu0 0
      %1153 = vmatprep.subr.bf16.mxu0 0
      %1154 = vmatpush1.bf16.msra.mxu0 0
      %1155 = vmatprep.subr.bf16.mxu0 0
      %1156 = vmatpush1.bf16.msra.mxu0 0
      %1157 = vmatprep.subr.bf16.mxu0 0
      %1158 = vmatpush1.bf16.msra.mxu0 0
      %1159 = vmatprep.mubr.bf16.mxu0 0
      %1160 = vmatmul.mubr.bf16.gmra.mrb[0].mxu0 %v1122
      %v1161 = vpop.f32.mrb[0].mxu0
      %v1162 = vadd.f32 0.0, %v1161
      %v1163 = vpop.f32.mrb[0].mxu0
      %v1164 = vpop.f32.mrb[0].mxu0
      %v1165 = vpop.f32.mrb[0].mxu0
      %1166 = vdwg.mxu0
      %1167 = vst.msk [vmem:[#allocation3] sm:$0xff] %vm949, %v1114
      %1168 = vst.msk [vmem:[#allocation3 + $0x8] sm:$0xff] %vm949, %v1162
      %1170 = vrot.lane.b32.xlu0 %v930, 112
      %v1171 = vpop.permute.xlu0 %1170
      %1172 = vrot.lane.b32.xlu0 %v932, 80
      %v1173 = vpop.permute.xlu0 %1172
      %v1175 = vsel %vm949, %v1171, 0
      %v1178 = vsel %vm949, %v1173, 0
      %1180 = vmatprep.subr.bf16.mxu0 0
      %1181 = vmatpush1.bf16.xpose.msra.mxu0 %v1178
      %1182 = vmatprep.subr.bf16.mxu0 0
      %1183 = vmatpush1.bf16.xpose.msra.mxu0 0
      %1184 = vmatprep.subr.bf16.mxu0 0
      %1185 = vmatpush1.bf16.xpose.msra.mxu0 0
      %1186 = vmatprep.subr.bf16.mxu0 0
      %1187 = vmatpush1.bf16.xpose.msra.mxu0 0
      %1188 = vmatprep.subr.bf16.mxu0 0
      %1189 = vmatpush1.bf16.xpose.msra.mxu0 0
      %1190 = vmatprep.subr.bf16.mxu0 0
      %1191 = vmatpush1.bf16.xpose.msra.mxu0 0
      %1192 = vmatprep.subr.bf16.mxu0 0
      %1193 = vmatpush1.bf16.xpose.msra.mxu0 0
      %1194 = vmatprep.subr.bf16.mxu0 0
      %1195 = vmatpush1.bf16.xpose.msra.mxu0 0
      %1196 = vmatprep.subr.bf16.mxu0 0
      %1197 = vmatpush1.bf16.xpose.msra.mxu0 0
      %1198 = vmatprep.subr.bf16.mxu0 0
      %1199 = vmatpush1.bf16.xpose.msra.mxu0 0
      %1200 = vmatprep.subr.bf16.mxu0 0
      %1201 = vmatpush1.bf16.xpose.msra.mxu0 0
      %1202 = vmatprep.subr.bf16.mxu0 0
      %1203 = vmatpush1.bf16.xpose.msra.mxu0 0
      %1204 = vmatprep.subr.bf16.mxu0 0
      %1205 = vmatpush1.bf16.xpose.msra.mxu0 0
      %1206 = vmatprep.subr.bf16.mxu0 0
      %1207 = vmatpush1.bf16.xpose.msra.mxu0 0
      %1208 = vmatprep.subr.bf16.mxu0 0
      %1209 = vmatpush1.bf16.xpose.msra.mxu0 0
      %1210 = vmatprep.subr.bf16.mxu0 0
      %1211 = vmatpush1.bf16.xpose.msra.mxu0 0
      %1212 = vmatprep.mubr.bf16.mxu0 0
      %1213 = vmatmul.mubr.bf16.gmra.mrb[0].mxu0 %v1175
      %v1214 = vpop.f32.mrb[0].mxu0
      %v1215 = vadd.f32 %v939, %v1214
      %v1216 = vpop.f32.mrb[0].mxu0
      %v1217 = vpop.f32.mrb[0].mxu0
      %v1218 = vpop.f32.mrb[0].mxu0
      %1219 = vdwg.mxu0
      %1221 = vrot.lane.b32.xlu0 %v931, 112
      %v1222 = vpop.permute.xlu0 %1221
      %1223 = vrot.lane.b32.xlu0 %v933, 80
      %v1224 = vpop.permute.xlu0 %1223
      %v1226 = vsel %vm949, %v1222, 0
      %v1229 = vsel %vm949, %v1224, 0
      %1231 = vmatprep.subr.bf16.mxu0 0
      %1232 = vmatpush1.bf16.xpose.msra.mxu0 %v1229
      %1233 = vmatprep.subr.bf16.mxu0 0
      %1234 = vmatpush1.bf16.xpose.msra.mxu0 0
      %1235 = vmatprep.subr.bf16.mxu0 0
      %1236 = vmatpush1.bf16.xpose.msra.mxu0 0
      %1237 = vmatprep.subr.bf16.mxu0 0
      %1238 = vmatpush1.bf16.xpose.msra.mxu0 0
      %1239 = vmatprep.subr.bf16.mxu0 0
      %1240 = vmatpush1.bf16.xpose.msra.mxu0 0
      %1241 = vmatprep.subr.bf16.mxu0 0
      %1242 = vmatpush1.bf16.xpose.msra.mxu0 0
      %1243 = vmatprep.subr.bf16.mxu0 0
      %1244 = vmatpush1.bf16.xpose.msra.mxu0 0
      %1245 = vmatprep.subr.bf16.mxu0 0
      %1246 = vmatpush1.bf16.xpose.msra.mxu0 0
      %1247 = vmatprep.subr.bf16.mxu0 0
      %1248 = vmatpush1.bf16.xpose.msra.mxu0 0
      %1249 = vmatprep.subr.bf16.mxu0 0
      %1250 = vmatpush1.bf16.xpose.msra.mxu0 0
      %1251 = vmatprep.subr.bf16.mxu0 0
      %1252 = vmatpush1.bf16.xpose.msra.mxu0 0
      %1253 = vmatprep.subr.bf16.mxu0 0
      %1254 = vmatpush1.bf16.xpose.msra.mxu0 0
      %1255 = vmatprep.subr.bf16.mxu0 0
      %1256 = vmatpush1.bf16.xpose.msra.mxu0 0
      %1257 = vmatprep.subr.bf16.mxu0 0
      %1258 = vmatpush1.bf16.xpose.msra.mxu0 0
      %1259 = vmatprep.subr.bf16.mxu0 0
      %1260 = vmatpush1.bf16.xpose.msra.mxu0 0
      %1261 = vmatprep.subr.bf16.mxu0 0
      %1262 = vmatpush1.bf16.xpose.msra.mxu0 0
      %1263 = vmatprep.mubr.bf16.mxu0 0
      %1264 = vmatmul.mubr.bf16.gmra.mrb[0].mxu0 %v1226
      %v1265 = vpop.f32.mrb[0].mxu0
      %v1266 = vadd.f32 %v943, %v1265
      %v1267 = vpop.f32.mrb[0].mxu0
      %v1268 = vpop.f32.mrb[0].mxu0
      %v1269 = vpop.f32.mrb[0].mxu0
      %1270 = vdwg.mxu0
      %v1271 = vsel %vm1045, %v1215, -inf
      %1272 = vmax.xlane.f32.xlu0 %v1271
      %v1273 = vpop.xlane.xlu0 %1272
      %v1274 = vsel %vm1045, %v1266, -inf
      %1275 = vmax.xlane.f32.xlu0 %v1274
      %v1276 = vpop.xlane.xlu0 %1275
      %v1277 = vsub.f32 %v1215, %v1273
      %v1278 = vsub.f32 %v1266, %v1276
      %v1279 = vmul.f32 %v1277, 1.442695
      %v1280 = vpow.pop %v1279
      %v1281 = vmul.f32 %v1278, 1.442695
      %v1282 = vpow.pop %v1281
      %v1283 = vsel %vm1045, %v1280, 0.0
      %1284 = vadd.xlane.f32.xlu0 %v1283
      %v1285 = vpop.xlane.xlu0 %1284
      %v1286 = vsel %vm1045, %v1282, 0.0
      %1287 = vadd.xlane.f32.xlu0 %v1286
      %v1288 = vpop.xlane.xlu0 %1287
      %v1289 = vrcp.pop %v1285
      %v1290 = vrcp.pop %v1288
      %v1291 = vmul.f32 %v1280, %v1289
      %v1292 = vmul.f32 %v1282, %v1290
      %v1293 = vpack.c.bf16 %v1291, %v1291
      %v1294 = vpack.c.bf16 %v1292, %v1292
      %1295 = vrot.lane.b32.xlu0 %v932, 48
      %v1296 = vpop.permute.xlu0 %1295
      %v1298 = vsel %vm1045, %v1293, 0
      %v1301 = vsel %vm1075, %v1296, 0
      %1303 = vmatprep.subr.bf16.mxu0 0
      %1304 = vmatpush1.bf16.msra.mxu0 %v1301
      %1305 = vmatprep.subr.bf16.mxu0 0
      %1306 = vmatpush1.bf16.msra.mxu0 0
      %1307 = vmatprep.subr.bf16.mxu0 0
      %1308 = vmatpush1.bf16.msra.mxu0 0
      %1309 = vmatprep.subr.bf16.mxu0 0
      %1310 = vmatpush1.bf16.msra.mxu0 0
      %1311 = vmatprep.subr.bf16.mxu0 0
      %1312 = vmatpush1.bf16.msra.mxu0 0
      %1313 = vmatprep.subr.bf16.mxu0 0
      %1314 = vmatpush1.bf16.msra.mxu0 0
      %1315 = vmatprep.subr.bf16.mxu0 0
      %1316 = vmatpush1.bf16.msra.mxu0 0
      %1317 = vmatprep.subr.bf16.mxu0 0
      %1318 = vmatpush1.bf16.msra.mxu0 0
      %1319 = vmatprep.subr.bf16.mxu0 0
      %1320 = vmatpush1.bf16.msra.mxu0 0
      %1321 = vmatprep.subr.bf16.mxu0 0
      %1322 = vmatpush1.bf16.msra.mxu0 0
      %1323 = vmatprep.subr.bf16.mxu0 0
      %1324 = vmatpush1.bf16.msra.mxu0 0
      %1325 = vmatprep.subr.bf16.mxu0 0
      %1326 = vmatpush1.bf16.msra.mxu0 0
      %1327 = vmatprep.subr.bf16.mxu0 0
      %1328 = vmatpush1.bf16.msra.mxu0 0
      %1329 = vmatprep.subr.bf16.mxu0 0
      %1330 = vmatpush1.bf16.msra.mxu0 0
      %1331 = vmatprep.subr.bf16.mxu0 0
      %1332 = vmatpush1.bf16.msra.mxu0 0
      %1333 = vmatprep.subr.bf16.mxu0 0
      %1334 = vmatpush1.bf16.msra.mxu0 0
      %1335 = vmatprep.mubr.bf16.mxu0 0
      %1336 = vmatmul.mubr.bf16.gmra.mrb[0].mxu0 %v1298
      %v1337 = vpop.f32.mrb[0].mxu0
      %v1338 = vadd.f32 0.0, %v1337
      %v1339 = vpop.f32.mrb[0].mxu0
      %v1340 = vpop.f32.mrb[0].mxu0
      %v1341 = vpop.f32.mrb[0].mxu0
      %1342 = vdwg.mxu0
      %1343 = vrot.lane.b32.xlu0 %v933, 48
      %v1344 = vpop.permute.xlu0 %1343
      %v1346 = vsel %vm1045, %v1294, 0
      %v1349 = vsel %vm1075, %v1344, 0
      %1351 = vmatprep.subr.bf16.mxu0 0
      %1352 = vmatpush1.bf16.msra.mxu0 %v1349
      %1353 = vmatprep.subr.bf16.mxu0 0
      %1354 = vmatpush1.bf16.msra.mxu0 0
      %1355 = vmatprep.subr.bf16.mxu0 0
      %1356 = vmatpush1.bf16.msra.mxu0 0
      %1357 = vmatprep.subr.bf16.mxu0 0
      %1358 = vmatpush1.bf16.msra.mxu0 0
      %1359 = vmatprep.subr.bf16.mxu0 0
      %1360 = vmatpush1.bf16.msra.mxu0 0
      %1361 = vmatprep.subr.bf16.mxu0 0
      %1362 = vmatpush1.bf16.msra.mxu0 0
      %1363 = vmatprep.subr.bf16.mxu0 0
      %1364 = vmatpush1.bf16.msra.mxu0 0
      %1365 = vmatprep.subr.bf16.mxu0 0
      %1366 = vmatpush1.bf16.msra.mxu0 0
      %1367 = vmatprep.subr.bf16.mxu0 0
      %1368 = vmatpush1.bf16.msra.mxu0 0
      %1369 = vmatprep.subr.bf16.mxu0 0
      %1370 = vmatpush1.bf16.msra.mxu0 0
      %1371 = vmatprep.subr.bf16.mxu0 0
      %1372 = vmatpush1.bf16.msra.mxu0 0
      %1373 = vmatprep.subr.bf16.mxu0 0
      %1374 = vmatpush1.bf16.msra.mxu0 0
      %1375 = vmatprep.subr.bf16.mxu0 0
      %1376 = vmatpush1.bf16.msra.mxu0 0
      %1377 = vmatprep.subr.bf16.mxu0 0
      %1378 = vmatpush1.bf16.msra.mxu0 0
      %1379 = vmatprep.subr.bf16.mxu0 0
      %1380 = vmatpush1.bf16.msra.mxu0 0
      %1381 = vmatprep.subr.bf16.mxu0 0
      %1382 = vmatpush1.bf16.msra.mxu0 0
      %1383 = vmatprep.mubr.bf16.mxu0 0
      %1384 = vmatmul.mubr.bf16.gmra.mrb[0].mxu0 %v1346
      %v1385 = vpop.f32.mrb[0].mxu0
      %v1386 = vadd.f32 0.0, %v1385
      %v1387 = vpop.f32.mrb[0].mxu0
      %v1388 = vpop.f32.mrb[0].mxu0
      %v1389 = vpop.f32.mrb[0].mxu0
      %1390 = vdwg.mxu0
      %1393 = vrot.lane.b32.xlu0 %v1338, 16
      %v1394 = vpop.permute.xlu0 %1393
      %1395 = vrot.lane.b32.xlu0 %v1386, 16
      %v1396 = vpop.permute.xlu0 %1395
      %vm1399 = vcmask 261248
      %1400 = vst.msk [vmem:[#allocation3] sm:$0xff] %vm1399, %v1394
      %1401 = vst.msk [vmem:[#allocation3 + $0x8] sm:$0xff] %vm1399, %v1396
      %v1402 = vld [vmem:[#allocation3] sm:$0xff]
      %v1403 = vld [vmem:[#allocation3 + $0x8] sm:$0xff]
      %v1404 = vpack.c.bf16 %v1403, %v1402
      %v1405 = vld [vmem:[%s773] sm:$0xf]
      %v1406 = vld [vmem:[%s773 + $0x4] sm:$0xf]
      %v1407 = vld [vmem:[%s773 + $0x8] sm:$0xf]
      %v1408 = vld [vmem:[%s773 + $0xc] sm:$0xf]
      %v1409 = vld [vmem:[%s780] sm:$0x1]
      %v1411 = vlaneseq
      %v1412 = vshrl.u32 %v1411, 7
      %v1413 = vsub.s32 0, %v1412
      %v1414 = vrot.slane %v1409, %v1413
      %v1420 = vunpack.c.l.b16 %v1405
      %v1421 = vunpack.c.l.b16 %v1406
      %v1422 = vunpack.c.l.b16 %v1407
      %v1423 = vunpack.c.l.b16 %v1408
      %v1424 = vpack.c.b16 %v1421, %v1420
      %v1425 = vpack.c.b16 %v1423, %v1422
      %v1429 = vsel %vm883, %v1404, 0
      %1431 = vmatprep.subr.bf16.mxu0 0
      %1432 = vmatpush1.bf16.msra.mxu0 %v1424
      %1433 = vmatprep.subr.bf16.mxu0 0
      %1434 = vmatpush1.bf16.msra.mxu0 %v1425
      %1435 = vmatprep.subr.bf16.mxu0 0
      %1436 = vmatpush1.bf16.msra.mxu0 0
      %1437 = vmatprep.subr.bf16.mxu0 0
      %1438 = vmatpush1.bf16.msra.mxu0 0
      %1439 = vmatprep.subr.bf16.mxu0 0
      %1440 = vmatpush1.bf16.msra.mxu0 0
      %1441 = vmatprep.subr.bf16.mxu0 0
      %1442 = vmatpush1.bf16.msra.mxu0 0
      %1443 = vmatprep.subr.bf16.mxu0 0
      %1444 = vmatpush1.bf16.msra.mxu0 0
      %1445 = vmatprep.subr.bf16.mxu0 0
      %1446 = vmatpush1.bf16.msra.mxu0 0
      %1447 = vmatprep.subr.bf16.mxu0 0
      %1448 = vmatpush1.bf16.msra.mxu0 0
      %1449 = vmatprep.subr.bf16.mxu0 0
      %1450 = vmatpush1.bf16.msra.mxu0 0
      %1451 = vmatprep.subr.bf16.mxu0 0
      %1452 = vmatpush1.bf16.msra.mxu0 0
      %1453 = vmatprep.subr.bf16.mxu0 0
      %1454 = vmatpush1.bf16.msra.mxu0 0
      %1455 = vmatprep.subr.bf16.mxu0 0
      %1456 = vmatpush1.bf16.msra.mxu0 0
      %1457 = vmatprep.subr.bf16.mxu0 0
      %1458 = vmatpush1.bf16.msra.mxu0 0
      %1459 = vmatprep.subr.bf16.mxu0 0
      %1460 = vmatpush1.bf16.msra.mxu0 0
      %1461 = vmatprep.subr.bf16.mxu0 0
      %1462 = vmatpush1.bf16.msra.mxu0 0
      %1463 = vmatprep.mubr.bf16.mxu0 0
      %1464 = vmatmul.mubr.bf16.gmra.mrb[0].mxu0 %v1429
      %v1465 = vpop.f32.mrb[0].mxu0
      %v1466 = vadd.f32 %v1414, %v1465
      %v1467 = vpop.f32.mrb[0].mxu0
      %v1468 = vpop.f32.mrb[0].mxu0
      %v1469 = vadd.f32 %v1414, %v1468
      %v1470 = vpop.f32.mrb[0].mxu0
      %1471 = vdwg.mxu0
      %v1472 = vadd.f32 %v855, %v1466
      %v1473 = vadd.f32 %v856, %v1469
      %v1474 = vld [vmem:[%s787] sm:$0x1]
      %v1475 = vld [vmem:[%s794] sm:$0x1]
      %v1476 = vsel %vm883, %v1472, 0.0
      %1477 = vadd.xlane.f32.xlu0 %v1476
      %v1478 = vpop.xlane.xlu0 %1477
      %v1479 = vsel %vm883, %v1473, 0.0
      %1480 = vadd.xlane.f32.xlu0 %v1479
      %v1481 = vpop.xlane.xlu0 %1480
      %v1482 = vrcp.pop 32.0
      %v1483 = vmul.f32 %v1478, %v1482
      %v1484 = vmul.f32 %v1481, %v1482
      %v1485 = vsub.f32 %v1472, %v1483
      %v1486 = vsub.f32 %v1473, %v1484
      %v1487 = vmul.f32 %v1485, %v1485
      %v1488 = vmul.f32 %v1486, %v1486
      %v1489 = vsel %vm883, %v1487, 0.0
      %1490 = vadd.xlane.f32.xlu0 %v1489
      %v1491 = vpop.xlane.xlu0 %1490
      %v1492 = vsel %vm883, %v1488, 0.0
      %1493 = vadd.xlane.f32.xlu0 %v1492
      %v1494 = vpop.xlane.xlu0 %1493
      %v1495 = vmul.f32 %v1491, %v1482
      %v1496 = vmul.f32 %v1494, %v1482
      %v1497 = vadd.f32 %v1495, 1e-05
      %v1498 = vadd.f32 %v1496, 1e-05
      %v1499 = vrsqrt.pop %v1497
      %v1500 = vrsqrt.pop %v1498
      %v1501 = vmul.f32 %v1485, %v1499
      %v1502 = vmul.f32 %v1486, %v1500
      %v1504 = vlaneseq
      %v1505 = vshrl.u32 %v1504, 7
      %v1506 = vsub.s32 0, %v1505
      %v1507 = vrot.slane %v1474, %v1506
      %v1509 = vmul.f32 %v1501, %v1507
      %v1510 = vmul.f32 %v1502, %v1507
      %v1512 = vlaneseq
      %v1513 = vshrl.u32 %v1512, 7
      %v1514 = vsub.s32 0, %v1513
      %v1515 = vrot.slane %v1475, %v1514
      %v1517 = vadd.f32 %v1509, %v1515
      %v1518 = vadd.f32 %v1510, %v1515
      %v1519 = vpack.c.bf16 %v1518, %v1517
      %v1520 = vld [vmem:[%s803] sm:$0xf]
      %v1521 = vld [vmem:[%s803 + $0x4] sm:$0xf]
      %v1522 = vld [vmem:[%s803 + $0x8] sm:$0xf]
      %v1523 = vld [vmem:[%s803 + $0xc] sm:$0xf]
      %v1524 = vld [vmem:[%s810] sm:$0x1]
      %v1526 = vlaneseq
      %v1527 = vshrl.u32 %v1526, 7
      %v1528 = vsub.s32 0, %v1527
      %v1529 = vrot.slane %v1524, %v1528
      %v1535 = vunpack.c.l.b16 %v1520
      %v1536 = vunpack.c.l.b16 %v1521
      %v1537 = vunpack.c.l.b16 %v1522
      %v1538 = vunpack.c.l.b16 %v1523
      %v1539 = vpack.c.b16 %v1536, %v1535
      %v1540 = vpack.c.b16 %v1538, %v1537
      %v1544 = vsel %vm883, %v1519, 0
      %1546 = vmatprep.subr.bf16.mxu0 0
      %1547 = vmatpush1.bf16.msra.mxu0 %v1539
      %1548 = vmatprep.subr.bf16.mxu0 0
      %1549 = vmatpush1.bf16.msra.mxu0 %v1540
      %1550 = vmatprep.subr.bf16.mxu0 0
      %1551 = vmatpush1.bf16.msra.mxu0 0
      %1552 = vmatprep.subr.bf16.mxu0 0
      %1553 = vmatpush1.bf16.msra.mxu0 0
      %1554 = vmatprep.subr.bf16.mxu0 0
      %1555 = vmatpush1.bf16.msra.mxu0 0
      %1556 = vmatprep.subr.bf16.mxu0 0
      %1557 = vmatpush1.bf16.msra.mxu0 0
      %1558 = vmatprep.subr.bf16.mxu0 0
      %1559 = vmatpush1.bf16.msra.mxu0 0
      %1560 = vmatprep.subr.bf16.mxu0 0
      %1561 = vmatpush1.bf16.msra.mxu0 0
      %1562 = vmatprep.subr.bf16.mxu0 0
      %1563 = vmatpush1.bf16.msra.mxu0 0
      %1564 = vmatprep.subr.bf16.mxu0 0
      %1565 = vmatpush1.bf16.msra.mxu0 0
      %1566 = vmatprep.subr.bf16.mxu0 0
      %1567 = vmatpush1.bf16.msra.mxu0 0
      %1568 = vmatprep.subr.bf16.mxu0 0
      %1569 = vmatpush1.bf16.msra.mxu0 0
      %1570 = vmatprep.subr.bf16.mxu0 0
      %1571 = vmatpush1.bf16.msra.mxu0 0
      %1572 = vmatprep.subr.bf16.mxu0 0
      %1573 = vmatpush1.bf16.msra.mxu0 0
      %1574 = vmatprep.subr.bf16.mxu0 0
      %1575 = vmatpush1.bf16.msra.mxu0 0
      %1576 = vmatprep.subr.bf16.mxu0 0
      %1577 = vmatpush1.bf16.msra.mxu0 0
      %1578 = vmatprep.mubr.bf16.mxu0 0
      %1579 = vmatmul.mubr.bf16.gmra.mrb[0].mxu0 %v1544
      %v1580 = vpop.f32.mrb[0].mxu0
      %v1581 = vadd.f32 %v1529, %v1580
      %v1582 = vpop.f32.mrb[0].mxu0
      %v1583 = vpop.f32.mrb[0].mxu0
      %v1584 = vadd.f32 %v1529, %v1583
      %v1585 = vpop.f32.mrb[0].mxu0
      %1586 = vdwg.mxu0
      %v1587 = vmax.f32 %v1581, 0.0
      %v1588 = vmax.f32 %v1584, 0.0
      %v1589 = vpack.c.bf16 %v1588, %v1587
      %v1590 = vld [vmem:[%s819] sm:$0xf]
      %v1591 = vld [vmem:[%s819 + $0x4] sm:$0xf]
      %v1592 = vld [vmem:[%s819 + $0x8] sm:$0xf]
      %v1593 = vld [vmem:[%s819 + $0xc] sm:$0xf]
      %v1594 = vld [vmem:[%s819 + $0x10] sm:$0xf]
      %v1595 = vld [vmem:[%s819 + $0x14] sm:$0xf]
      %v1596 = vld [vmem:[%s819 + $0x18] sm:$0xf]
      %v1597 = vld [vmem:[%s819 + $0x1c] sm:$0xf]
      %v1598 = vld [vmem:[%s826] sm:$0x1]
      %v1600 = vlaneseq
      %v1601 = vshrl.u32 %v1600, 7
      %v1602 = vsub.s32 0, %v1601
      %v1603 = vrot.slane %v1598, %v1602
      %v1613 = vunpack.c.l.b16 %v1590
      %v1614 = vunpack.c.l.b16 %v1591
      %v1615 = vunpack.c.l.b16 %v1592
      %v1616 = vunpack.c.l.b16 %v1593
      %v1617 = vunpack.c.l.b16 %v1594
      %v1618 = vunpack.c.l.b16 %v1595
      %v1619 = vunpack.c.l.b16 %v1596
      %v1620 = vunpack.c.l.b16 %v1597
      %v1621 = vpack.c.b16 %v1614, %v1613
      %v1622 = vpack.c.b16 %v1616, %v1615
      %v1623 = vpack.c.b16 %v1618, %v1617
      %v1624 = vpack.c.b16 %v1620, %v1619
      %vm1629 = vcmask 523264
      %v1631 = vsel %vm1629, %v1589, 0
      %1633 = vmatprep.subr.bf16.mxu0 0
      %1634 = vmatpush1.bf16.msra.mxu0 %v1621
      %1635 = vmatprep.subr.bf16.mxu0 0
      %1636 = vmatpush1.bf16.msra.mxu0 %v1622
      %1637 = vmatprep.subr.bf16.mxu0 0
      %1638 = vmatpush1.bf16.msra.mxu0 %v1623
      %1639 = vmatprep.subr.bf16.mxu0 0
      %1640 = vmatpush1.bf16.msra.mxu0 %v1624
      %1641 = vmatprep.subr.bf16.mxu0 0
      %1642 = vmatpush1.bf16.msra.mxu0 0
      %1643 = vmatprep.subr.bf16.mxu0 0
      %1644 = vmatpush1.bf16.msra.mxu0 0
      %1645 = vmatprep.subr.bf16.mxu0 0
      %1646 = vmatpush1.bf16.msra.mxu0 0
      %1647 = vmatprep.subr.bf16.mxu0 0
      %1648 = vmatpush1.bf16.msra.mxu0 0
      %1649 = vmatprep.subr.bf16.mxu0 0
      %1650 = vmatpush1.bf16.msra.mxu0 0
      %1651 = vmatprep.subr.bf16.mxu0 0
      %1652 = vmatpush1.bf16.msra.mxu0 0
      %1653 = vmatprep.subr.bf16.mxu0 0
      %1654 = vmatpush1.bf16.msra.mxu0 0
      %1655 = vmatprep.subr.bf16.mxu0 0
      %1656 = vmatpush1.bf16.msra.mxu0 0
      %1657 = vmatprep.subr.bf16.mxu0 0
      %1658 = vmatpush1.bf16.msra.mxu0 0
      %1659 = vmatprep.subr.bf16.mxu0 0
      %1660 = vmatpush1.bf16.msra.mxu0 0
      %1661 = vmatprep.subr.bf16.mxu0 0
      %1662 = vmatpush1.bf16.msra.mxu0 0
      %1663 = vmatprep.subr.bf16.mxu0 0
      %1664 = vmatpush1.bf16.msra.mxu0 0
      %1665 = vmatprep.mubr.bf16.mxu0 0
      %1666 = vmatmul.mubr.bf16.gmra.mrb[0].mxu0 %v1631
      %v1667 = vpop.f32.mrb[0].mxu0
      %v1668 = vadd.f32 %v1603, %v1667
      %v1669 = vpop.f32.mrb[0].mxu0
      %v1670 = vpop.f32.mrb[0].mxu0
      %v1671 = vadd.f32 %v1603, %v1670
      %v1672 = vpop.f32.mrb[0].mxu0
      %1673 = vdwg.mxu0
      %v1674 = vadd.f32 %v1517, %v1668
      %v1675 = vadd.f32 %v1518, %v1671
      %v1676 = vld [vmem:[%s833] sm:$0x1]
      %v1677 = vld [vmem:[%s840] sm:$0x1]
      %v1678 = vsel %vm883, %v1674, 0.0
      %1679 = vadd.xlane.f32.xlu0 %v1678
      %v1680 = vpop.xlane.xlu0 %1679
      %v1681 = vsel %vm883, %v1675, 0.0
      %1682 = vadd.xlane.f32.xlu0 %v1681
      %v1683 = vpop.xlane.xlu0 %1682
      %v1684 = vmul.f32 %v1680, %v1482
      %v1685 = vmul.f32 %v1683, %v1482
      %v1686 = vsub.f32 %v1674, %v1684
      %v1687 = vsub.f32 %v1675, %v1685
      %v1688 = vmul.f32 %v1686, %v1686
      %v1689 = vmul.f32 %v1687, %v1687
      %v1690 = vsel %vm883, %v1688, 0.0
      %1691 = vadd.xlane.f32.xlu0 %v1690
      %v1692 = vpop.xlane.xlu0 %1691
      %v1693 = vsel %vm883, %v1689, 0.0
      %1694 = vadd.xlane.f32.xlu0 %v1693
      %v1695 = vpop.xlane.xlu0 %1694
      %v1696 = vmul.f32 %v1692, %v1482
      %v1697 = vmul.f32 %v1695, %v1482
      %v1698 = vadd.f32 %v1696, 1e-05
      %v1699 = vadd.f32 %v1697, 1e-05
      %v1700 = vrsqrt.pop %v1698
      %v1701 = vrsqrt.pop %v1699
      %v1702 = vmul.f32 %v1686, %v1700
      %v1703 = vmul.f32 %v1687, %v1701
      %v1705 = vlaneseq
      %v1706 = vshrl.u32 %v1705, 7
      %v1707 = vsub.s32 0, %v1706
      %v1708 = vrot.slane %v1676, %v1707
      %v1710 = vmul.f32 %v1702, %v1708
      %v1711 = vmul.f32 %v1703, %v1708
      %v1713 = vlaneseq
      %v1714 = vshrl.u32 %v1713, 7
      %v1715 = vsub.s32 0, %v1714
      %v1716 = vrot.slane %v1677, %v1715
      %v1718 = vadd.f32 %v1710, %v1716
      %v1719 = vadd.f32 %v1711, %v1716
      %1720 = vst.msk [vmem:[#allocation2] sm:$0xff] %vm883, %v1718
      %1721 = vst.msk [vmem:[#allocation2 + $0x8] sm:$0xff] %vm883, %v1719
      %p1722 = scmp.eq.s32.totalorder %s37, 1
      // Predicated region
      $region81: #{fdsa_forward.2} parent=75 // pred_check
        %p1723 = pneg %p1722
      $region82: #{fdsa_forward.2} parent=75 // pred_check_branch
        %1725 = sbr.rel (%p1723) target = $region84
      $region83: #{fdsa_forward.2} parent=75 // pred_region
        %s1726 = sld [smem:[#allocation5]]
        %v1727 = vlaneseq
        %v1728 = vshrl.u32 %v1727, 7
        %v1729 = vstv %s1726
        %vm1730 = vcmp.eq.s32.totalorder %v1728, %v1729
        %v1731 = vsel %vm1730, 1, 0
        %v1732 = vcvt.s32.f32 %v1731
        %v1733 = vld [vmem:[#allocation2] sm:$0xff]
        %v1734 = vmul.f32 %v1733, %v1732
        %v1735 = vsel %vm883, %v1734, 0.0
        %v1736 = vrot.slane %v1735, 4
        %v1737 = vadd.f32 %v1735, %v1736
        %v1738 = vrot.slane %v1737, 2
        %v1739 = vadd.f32 %v1737, %v1738
        %v1740 = vrot.slane %v1739, 1
        %v1741 = vadd.f32 %v1739, %v1740
        %s1742 = sld [smem:[#allocation5 + $0x1]]
        %v1743 = vstv %s1742
        %vm1744 = vcmp.eq.s32.totalorder %v1728, %v1743
        %v1745 = vsel %vm1744, 1, 0
        %v1746 = vcvt.s32.f32 %v1745
        %s1747 = scalar_lea.vmem [#allocation2], 8
        %v1748 = vld [vmem:[%s1747] sm:$0xff]
        %v1749 = vmul.f32 %v1748, %v1746
        %v1750 = vsel %vm883, %v1749, 0.0
        %v1751 = vrot.slane %v1750, 4
        %v1752 = vadd.f32 %v1750, %v1751
        %v1753 = vrot.slane %v1752, 2
        %v1754 = vadd.f32 %v1752, %v1753
        %v1755 = vrot.slane %v1754, 1
        %v1756 = vadd.f32 %v1754, %v1755
        %vm1757 = vcmask 1040384
        %v1758 = vsel %vm1757, %v1741, %v1756
        %vm1759 = vcmask 254976
        %1760 = vst.msk [vmem:[%s844] sm:$0x3] %vm1759, %v1758
      $region84: #{fdsa_forward.2} parent=75 // pred_fallthru
        _
      %p1761 = scmp.lt.s32.totalorder %s36, 1
      %s1762 = scalar_select %p1761, %s36, 1
      %s1763 = smul.addr %s1762, 2
      %s1764 = scalar_lea.vmem %s15, %s1763
      // Predicated region
      $region85: #{fdsa_forward.2} parent=75 // pred_check
        %p1765 = pneg %p445
      $region86: #{fdsa_forward.2} parent=75 // pred_check_branch
        %1767 = sbr.rel (%p1765) target = $region88
      $region87: #{fdsa_forward.2} parent=75 // pred_region
        _
      $region88: #{fdsa_forward.2} parent=75 // pred_fallthru
        _
    $region76: #{fdsa_forward.2} parent=5 // pred_fallthru
      _
    %p1768 = scmp.le.s32.totalorder 2, %s27
    // Predicated region
    $region89: #{fdsa_forward.2} parent=5 // pred_check
      %p1769 = pneg %p1768
    $region90: #{fdsa_forward.2} parent=5 // pred_check_branch
      %1771 = sbr.rel (%p1769) target = $region92
    $region91: #{fdsa_forward.2} parent=5 // pred_region
      %s1772 = ssub.s32 %s27, 2
      // Predicated region
      $region93: #{fdsa_forward.2} parent=91 // pred_check
        %p1773 = pneg %p451
      $region94: #{fdsa_forward.2} parent=91 // pred_check_branch
        %1775 = sbr.rel (%p1773) target = $region96
      $region95: #{fdsa_forward.2} parent=91 // pred_region
        %p1776 = scmp.lt.s32.totalorder %s38, 1
        %s1777 = scalar_select %p1776, %s38, 1
        %s1778 = smul.addr %s1777, 2
        %s1779 = scalar_lea.vmem %s15, %s1778
      $region96: #{fdsa_forward.2} parent=91 // pred_fallthru
        _
    $region92: #{fdsa_forward.2} parent=5 // pred_fallthru
      _
  $region6: #{fdsa_forward.2} parent=0 // loop_footer
    %s31 = sadd.s32 1, %s27
  $region7: #{fdsa_forward.2} parent=0 // loop_footer_branch
    %26 = sbr.rel target = $region3
  $region8: #{fdsa_forward.2} parent=0 // loop_exit
    _

</llo_original>
